<compile_context>
chip_gen: v7x
topology: tpu7x:2x2x1
jax: 0.10.0
libtpu: 0.0.40
codegen_flags: <defaults>
</compile_context>

<pallas_src>
import functools
import math

import jax
import jax.numpy as jnp
import numpy as np
from jax import lax
from jax.experimental import pallas as pl
from jax.experimental.pallas import tpu as pltpu

LN_EPS = 1e-6  # onmt TransformerEncoderLayer / PositionwiseFeedForward use eps=1e-6


def _layer_norm(x, gamma, beta):
    mu = jnp.mean(x, axis=-1, keepdims=True)
    var = jnp.mean((x - mu) ** 2, axis=-1, keepdims=True)
    return (x - mu) * lax.rsqrt(var + LN_EPS) * gamma + beta


def context_reps_kernel(len_ref,                       # (B_TILE, 1) int32 lengths
                        x_ref,                         # (B_TILE, S, D) source states
                        cls_ref,                       # (1, D) shared CLS vector
                        sel_dh_ref, sel_hd_ref,        # (D, H) / (H, D) 0/1 head selectors
                        g1_ref, be1_ref,               # LN1
                        wq_ref, bq_ref, wk_ref, bk_ref, wv_ref, bv_ref,
                        wo_ref, bo_ref,                # MHA projections
                        g2_ref, be2_ref,               # LN2 (inside FFN)
                        w1_ref, b1_ref, w2_ref, b2_ref,  # FFN
                        o_ref,                         # (B_TILE, D)
                        *, heads, b_tile, seq):
    D = x_ref.shape[-1]
    dh = D // heads
    scale = 1.0 / math.sqrt(dh)

    g1 = g1_ref[...]
    be1 = be1_ref[...]
    sel_dh = sel_dh_ref[...]                                                   # (D, H)
    sel_hd = sel_hd_ref[...]                                                   # (H, D)

    # ---- CLS token path (identical for every batch element; computed once) ----
    cls_row = cls_ref[...].astype(jnp.float32)                                 # (1, D)
    h_c = _layer_norm(cls_row, g1, be1)
    q0s = (jnp.dot(h_c, wq_ref[...], preferred_element_type=jnp.float32)
           + bq_ref[...]) * scale                                              # (1, D)
    k_c = jnp.dot(h_c, wk_ref[...], preferred_element_type=jnp.float32) + bk_ref[...]
    v_c = jnp.dot(h_c, wv_ref[...], preferred_element_type=jnp.float32) + bv_ref[...]
    score_c = jnp.dot(k_c * q0s, sel_dh, preferred_element_type=jnp.float32)   # (1, H)

    # ---- source tokens: only K / V are needed (non-CLS query rows are discarded) ----
    x2d = x_ref[...].reshape(b_tile * seq, D).astype(jnp.float32)              # (BS, D)
    h = _layer_norm(x2d, g1, be1)
    k = jnp.dot(h, wk_ref[...], preferred_element_type=jnp.float32) + bk_ref[...]
    v = jnp.dot(h, wv_ref[...], preferred_element_type=jnp.float32) + bv_ref[...]

    # Per-head scores of the shared CLS query against every key, all batches at once:
    # one VPU multiply + one (BS, D) x (D, H) MXU contraction replaces H tiny matmuls.
    scores = jnp.dot(k * q0s, sel_dh, preferred_element_type=jnp.float32)      # (BS, H)
    scores3 = scores.reshape(b_tile, seq, heads)                               # (B, S, H)

    # key mask: token s of batch b is a valid key iff s < length[b]; CLS always valid
    pos = lax.broadcasted_iota(jnp.int32, (b_tile, seq, 1), 1)
    lens3 = len_ref[...].reshape(b_tile, 1, 1)
    scores3 = jnp.where(pos < lens3, scores3, -1e18)

    # numerically-stable per-batch softmax over (CLS + seq) keys, per head
    m_b = jnp.maximum(jnp.max(scores3, axis=1), score_c)                       # (B, H)
    p_x = jnp.exp(scores3 - m_b[:, None, :])                                   # (B, S, H)
    p_c = jnp.exp(score_c - m_b)                                               # (B, H)
    denom = p_c + jnp.sum(p_x, axis=1)                                         # (B, H)

    # expand per-head weights onto the feature lanes and combine with V
    w_x = jnp.dot(p_x.reshape(b_tile * seq, heads), sel_hd,
                  preferred_element_type=jnp.float32).reshape(b_tile, seq, D)  # (B, S, D)
    w_c = jnp.dot(p_c, sel_hd, preferred_element_type=jnp.float32)             # (B, D)
    inv = jnp.dot(1.0 / denom, sel_hd, preferred_element_type=jnp.float32)     # (B, D)
    v3 = v.reshape(b_tile, seq, D)
    ctx = (w_c * v_c + jnp.sum(w_x * v3, axis=1)) * inv                        # (B, D)

    attn_out = jnp.dot(ctx, wo_ref[...], preferred_element_type=jnp.float32) + bo_ref[...]
    out1 = attn_out + cls_row                              # residual = original CLS input row

    # ---- position-wise feed-forward on the CLS rows only ----
    h2 = _layer_norm(out1, g2_ref[...], be2_ref[...])
    inter = jnp.maximum(
        jnp.dot(h2, w1_ref[...], preferred_element_type=jnp.float32) + b1_ref[...], 0.0)
    ffn = jnp.dot(inter, w2_ref[...], preferred_element_type=jnp.float32) + b2_ref[...]
    o_ref[...] = (ffn + out1).astype(o_ref.dtype)


_WEIGHT_ORDER = ["g1", "be1", "wq", "bq", "wk", "bk", "wv", "bv",
                 "wo", "bo", "g2", "be2", "w1", "b1", "w2", "b2"]


def context_reps(x_states, src_lengths, params, *, heads, b_tile=None):
    """x_states: [B, S, D] float32; src_lengths: [B] int32 -> [B, D] float32."""
    B, S, D = x_states.shape
    if b_tile is None:
        b_tile = B if B <= 8 else 8            # == full dim, or a multiple of 8 sublanes
    b_pad = pl.cdiv(B, b_tile) * b_tile
    lens = src_lengths.astype(jnp.int32).reshape(B, 1)
    if b_pad != B:
        x_states = jnp.pad(x_states, ((0, b_pad - B), (0, 0), (0, 0)))
        lens = jnp.pad(lens, ((0, b_pad - B), (0, 0)))   # padded rows: CLS-only softmax, no NaN

    cls2d = params["cls_vec"].reshape(1, D).astype(jnp.float32)

    # host-built 0/1 head selectors (constant block index -> fetched once by the pipeline)
    dh = D // heads
    sel_dh_np = (np.arange(D)[:, None] // dh == np.arange(heads)[None, :]).astype(np.float32)
    sel_dh = jnp.asarray(sel_dh_np)                       # (D, H)
    sel_hd = jnp.asarray(np.ascontiguousarray(sel_dh_np.T))   # (H, D)

    def full_spec(shape):
        zeros = (0,) * len(shape)
        return pl.BlockSpec(shape, lambda g, _z=zeros: _z)

    weight_args = [params[n] for n in _WEIGHT_ORDER]
    weight_specs = [full_spec(params[n].shape) for n in _WEIGHT_ORDER]

    out = pl.pallas_call(
        functools.partial(context_reps_kernel, heads=heads, b_tile=b_tile, seq=S),
        out_shape=jax.ShapeDtypeStruct((b_pad, D), jnp.float32),
        grid_spec=pltpu.PrefetchScalarGridSpec(
            num_scalar_prefetch=0,
            grid=(b_pad // b_tile,),
            in_specs=[pl.BlockSpec((b_tile, 1), lambda g: (g, 0)),
                      pl.BlockSpec((b_tile, S, D), lambda g: (g, 0, 0)),
                      full_spec((1, D)),
                      full_spec((D, heads)),
                      full_spec((heads, D))] + weight_specs,
            out_specs=pl.BlockSpec((b_tile, D), lambda g: (g, 0)),
        ),
        compiler_params=pltpu.CompilerParams(dimension_semantics=("parallel",)),
    )(lens, x_states, cls2d, sel_dh, sel_hd, *weight_args)
    return out[:B]                                        # [B, D]


# -------------------- pure-JAX reference (for correctness check) --------------------
def context_reps_ref(x_states, src_lengths, params, *, heads):
    B, S, D = x_states.shape
    T = S + 1
    dh = D // heads
    cls = jnp.broadcast_to(params["cls_vec"], (B, 1, D))
    x = jnp.concatenate([cls, x_states], axis=1)

    def ln(y, g, b):
        mu = jnp.mean(y, -1, keepdims=True)
        var = jnp.mean((y - mu) ** 2, -1, keepdims=True)
        return (y - mu) / jnp.sqrt(var + LN_EPS) * g + b

    h = ln(x, params["g1"], params["be1"])
    q = (h @ params["wq"] + params["bq"]).reshape(B, T, heads, dh).transpose(0, 2, 1, 3)
    k = (h @ params["wk"] + params["bk"]).reshape(B, T, heads, dh).transpose(0, 2, 1, 3)
    v = (h @ params["wv"] + params["bv"]).reshape(B, T, heads, dh).transpose(0, 2, 1, 3)
    s = jnp.einsum("bhqd,bhkd->bhqk", q, k) / math.sqrt(dh)
    key_ok = (jnp.arange(T)[None, :] < (src_lengths + 1)[:, None])[:, None, None, :]
    s = jnp.where(key_ok, s, -1e18)
    p = jax.nn.softmax(s, axis=-1)
    ctx = jnp.einsum("bhqk,bhkd->bhqd", p, v).transpose(0, 2, 1, 3).reshape(B, T, D)
    out1 = ctx @ params["wo"] + params["bo"] + x
    h2 = ln(out1, params["g2"], params["be2"])
    ffn = jnp.maximum(h2 @ params["w1"] + params["b1"], 0.0) @ params["w2"] + params["b2"]
    return (ffn + out1)[:, 0, :]


# -------------------- deterministic parameter init --------------------
def init_params(key, D, FF):
    ks = jax.random.split(key, 8)

    def xavier(k, shape):
        limit = math.sqrt(6.0 / (shape[0] + shape[1]))
        return jax.random.uniform(k, shape, jnp.float32, -limit, limit)

    return dict(
        cls_vec=0.02 * jax.random.normal(ks[0], (1, 1, D), jnp.float32),
        g1=jnp.ones((1, D), jnp.float32), be1=jnp.zeros((1, D), jnp.float32),
        wq=xavier(ks[1], (D, D)), bq=0.01 * jax.random.normal(ks[5], (1, D), jnp.float32),
        wk=xavier(ks[2], (D, D)), bk=jnp.zeros((1, D), jnp.float32),
        wv=xavier(ks[3], (D, D)), bv=jnp.zeros((1, D), jnp.float32),
        wo=xavier(ks[4], (D, D)), bo=0.01 * jax.random.normal(ks[6], (1, D), jnp.float32),
        g2=jnp.ones((1, D), jnp.float32), be2=jnp.zeros((1, D), jnp.float32),
        w1=xavier(ks[7], (D, FF)), b1=jnp.zeros((1, FF), jnp.float32),
        w2=xavier(jax.random.fold_in(key, 99), (FF, D)), b2=jnp.zeros((1, D), jnp.float32),
    )


if __name__ == "__main__":
    # small shapes consistent with the module: model_dim=32, heads=4, ff=64, seq=8, batch=2
    B, S, D, H, FF = 2, 8, 32, 4, 64
    key = jax.random.PRNGKey(0)
    kx, kp = jax.random.split(key, 2)
    x_states = jax.random.normal(kx, (B, S, D), jnp.float32)
    src_lengths = jnp.array([S, 5], dtype=jnp.int32)
    params = init_params(kp, D, FF)

    out = context_reps(x_states, src_lengths, params, heads=H)
    out = jax.block_until_ready(out)
    assert out.shape == (B, D), out.shape

    ref = context_reps_ref(x_states, src_lengths, params, heads=H)
    np.testing.assert_allclose(np.asarray(out), np.asarray(ref), atol=5e-4, rtol=5e-4)
    print("KERNEL_OK")
</pallas_src>

<mosaic_0001>
module attributes {stable_mosaic.version = 11 : i64} {
  func.func @context_reps_kernel(%arg0: i32, %arg1: memref<2x1xi32, #tpu.memory_space<vmem>>, %arg2: memref<2x8x32xf32, #tpu.memory_space<vmem>>, %arg3: memref<1x32xf32, #tpu.memory_space<vmem>>, %arg4: memref<32x4xf32, #tpu.memory_space<vmem>>, %arg5: memref<4x32xf32, #tpu.memory_space<vmem>>, %arg6: memref<1x32xf32, #tpu.memory_space<vmem>>, %arg7: memref<1x32xf32, #tpu.memory_space<vmem>>, %arg8: memref<32x32xf32, #tpu.memory_space<vmem>>, %arg9: memref<1x32xf32, #tpu.memory_space<vmem>>, %arg10: memref<32x32xf32, #tpu.memory_space<vmem>>, %arg11: memref<1x32xf32, #tpu.memory_space<vmem>>, %arg12: memref<32x32xf32, #tpu.memory_space<vmem>>, %arg13: memref<1x32xf32, #tpu.memory_space<vmem>>, %arg14: memref<32x32xf32, #tpu.memory_space<vmem>>, %arg15: memref<1x32xf32, #tpu.memory_space<vmem>>, %arg16: memref<1x32xf32, #tpu.memory_space<vmem>>, %arg17: memref<1x32xf32, #tpu.memory_space<vmem>>, %arg18: memref<32x64xf32, #tpu.memory_space<vmem>>, %arg19: memref<1x64xf32, #tpu.memory_space<vmem>>, %arg20: memref<64x32xf32, #tpu.memory_space<vmem>>, %arg21: memref<1x32xf32, #tpu.memory_space<vmem>>, %arg22: memref<2x32xf32, #tpu.memory_space<vmem>>) attributes {dimension_semantics = [#tpu.dimension_semantics<parallel>], iteration_bounds = array<i64: 1>, scalar_prefetch = 0 : i64, scratch_operands = 0 : i64, tpu.core_type = #tpu.core_type<tc>, window_params = [{transform_indices = @transform_0, window_bounds = array<i64: 2, 1>}, {transform_indices = @transform_1, window_bounds = array<i64: 2, 8, 32>}, {pipeline_mode = #tpu.pipeline_mode<synchronous>, transform_indices = @transform_2, window_bounds = array<i64: 1, 32>}, {pipeline_mode = #tpu.pipeline_mode<synchronous>, transform_indices = @transform_3, window_bounds = array<i64: 32, 4>}, {pipeline_mode = #tpu.pipeline_mode<synchronous>, transform_indices = @transform_4, window_bounds = array<i64: 4, 32>}, {pipeline_mode = #tpu.pipeline_mode<synchronous>, transform_indices = @transform_5, window_bounds = array<i64: 1, 32>}, {pipeline_mode = #tpu.pipeline_mode<synchronous>, transform_indices = @transform_6, window_bounds = array<i64: 1, 32>}, {pipeline_mode = #tpu.pipeline_mode<synchronous>, transform_indices = @transform_7, window_bounds = array<i64: 32, 32>}, {pipeline_mode = #tpu.pipeline_mode<synchronous>, transform_indices = @transform_8, window_bounds = array<i64: 1, 32>}, {pipeline_mode = #tpu.pipeline_mode<synchronous>, transform_indices = @transform_9, window_bounds = array<i64: 32, 32>}, {pipeline_mode = #tpu.pipeline_mode<synchronous>, transform_indices = @transform_10, window_bounds = array<i64: 1, 32>}, {pipeline_mode = #tpu.pipeline_mode<synchronous>, transform_indices = @transform_11, window_bounds = array<i64: 32, 32>}, {pipeline_mode = #tpu.pipeline_mode<synchronous>, transform_indices = @transform_12, window_bounds = array<i64: 1, 32>}, {pipeline_mode = #tpu.pipeline_mode<synchronous>, transform_indices = @transform_13, window_bounds = array<i64: 32, 32>}, {pipeline_mode = #tpu.pipeline_mode<synchronous>, transform_indices = @transform_14, window_bounds = array<i64: 1, 32>}, {pipeline_mode = #tpu.pipeline_mode<synchronous>, transform_indices = @transform_15, window_bounds = array<i64: 1, 32>}, {pipeline_mode = #tpu.pipeline_mode<synchronous>, transform_indices = @transform_16, window_bounds = array<i64: 1, 32>}, {pipeline_mode = #tpu.pipeline_mode<synchronous>, transform_indices = @transform_17, window_bounds = array<i64: 32, 64>}, {pipeline_mode = #tpu.pipeline_mode<synchronous>, transform_indices = @transform_18, window_bounds = array<i64: 1, 64>}, {pipeline_mode = #tpu.pipeline_mode<synchronous>, transform_indices = @transform_19, window_bounds = array<i64: 64, 32>}, {pipeline_mode = #tpu.pipeline_mode<synchronous>, transform_indices = @transform_20, window_bounds = array<i64: 1, 32>}, {transform_indices = @transform_21, window_bounds = array<i64: 2, 32>}]} {
    %c0 = arith.constant 0 : index
    %c0_0 = arith.constant 0 : index
    %0 = vector.load %arg6[%c0, %c0_0] : memref<1x32xf32, #tpu.memory_space<vmem>>, vector<1x32xf32>
    %c0_1 = arith.constant 0 : index
    %c0_2 = arith.constant 0 : index
    %1 = vector.load %arg7[%c0_1, %c0_2] : memref<1x32xf32, #tpu.memory_space<vmem>>, vector<1x32xf32>
    %c0_3 = arith.constant 0 : index
    %c0_4 = arith.constant 0 : index
    %2 = vector.load %arg4[%c0_3, %c0_4] : memref<32x4xf32, #tpu.memory_space<vmem>>, vector<32x4xf32>
    %c0_5 = arith.constant 0 : index
    %c0_6 = arith.constant 0 : index
    %3 = vector.load %arg5[%c0_5, %c0_6] : memref<4x32xf32, #tpu.memory_space<vmem>>, vector<4x32xf32>
    %c0_7 = arith.constant 0 : index
    %c0_8 = arith.constant 0 : index
    %4 = vector.load %arg3[%c0_7, %c0_8] : memref<1x32xf32, #tpu.memory_space<vmem>>, vector<1x32xf32>
    %cst = arith.constant dense<0.000000e+00> : vector<1xf32>
    %5 = vector.multi_reduction <add>, %4, %cst [1] : vector<1x32xf32> to vector<1xf32>
    %6 = vector.shape_cast %5 : vector<1xf32> to vector<1x1xf32>
    %cst_9 = arith.constant 3.200000e+01 : f32
    %7 = vector.broadcast %cst_9 : f32 to vector<1x1xf32>
    %8 = arith.divf %6, %7 : vector<1x1xf32>
    %9 = vector.broadcast %8 : vector<1x1xf32> to vector<1x32xf32>
    %10 = arith.subf %4, %9 : vector<1x32xf32>
    %11 = arith.mulf %10, %10 : vector<1x32xf32>
    %cst_10 = arith.constant dense<0.000000e+00> : vector<1xf32>
    %12 = vector.multi_reduction <add>, %11, %cst_10 [1] : vector<1x32xf32> to vector<1xf32>
    %13 = vector.shape_cast %12 : vector<1xf32> to vector<1x1xf32>
    %cst_11 = arith.constant 3.200000e+01 : f32
    %14 = vector.broadcast %cst_11 : f32 to vector<1x1xf32>
    %15 = arith.divf %13, %14 : vector<1x1xf32>
    %16 = vector.broadcast %8 : vector<1x1xf32> to vector<1x32xf32>
    %17 = arith.subf %4, %16 : vector<1x32xf32>
    %cst_12 = arith.constant 9.99999997E-7 : f32
    %18 = vector.broadcast %cst_12 : f32 to vector<1x1xf32>
    %19 = arith.addf %15, %18 : vector<1x1xf32>
    %20 = math.rsqrt %19 : vector<1x1xf32>
    %21 = vector.broadcast %20 : vector<1x1xf32> to vector<1x32xf32>
    %22 = arith.mulf %17, %21 : vector<1x32xf32>
    %23 = arith.mulf %22, %0 : vector<1x32xf32>
    %24 = arith.addf %23, %1 : vector<1x32xf32>
    %c0_13 = arith.constant 0 : index
    %c0_14 = arith.constant 0 : index
    %25 = vector.load %arg8[%c0_13, %c0_14] : memref<32x32xf32, #tpu.memory_space<vmem>>, vector<32x32xf32>
    %cst_15 = arith.constant dense<0.000000e+00> : vector<1x32xf32>
    %26 = tpu.matmul %24, %25, %cst_15 {dimension_numbers = #tpu.dot_dimension_numbers<[1], [0], [0], [1], [0, 0, 1, 1], [], []>} : vector<1x32xf32>, vector<32x32xf32>, vector<1x32xf32> -> vector<1x32xf32>
    %c0_16 = arith.constant 0 : index
    %c0_17 = arith.constant 0 : index
    %27 = vector.load %arg9[%c0_16, %c0_17] : memref<1x32xf32, #tpu.memory_space<vmem>>, vector<1x32xf32>
    %28 = arith.addf %26, %27 : vector<1x32xf32>
    %cst_18 = arith.constant 0.353553385 : f32
    %29 = vector.broadcast %cst_18 : f32 to vector<1x32xf32>
    %30 = arith.mulf %28, %29 : vector<1x32xf32>
    %c0_19 = arith.constant 0 : index
    %c0_20 = arith.constant 0 : index
    %31 = vector.load %arg10[%c0_19, %c0_20] : memref<32x32xf32, #tpu.memory_space<vmem>>, vector<32x32xf32>
    %cst_21 = arith.constant dense<0.000000e+00> : vector<1x32xf32>
    %32 = tpu.matmul %24, %31, %cst_21 {dimension_numbers = #tpu.dot_dimension_numbers<[1], [0], [0], [1], [0, 0, 1, 1], [], []>} : vector<1x32xf32>, vector<32x32xf32>, vector<1x32xf32> -> vector<1x32xf32>
    %c0_22 = arith.constant 0 : index
    %c0_23 = arith.constant 0 : index
    %33 = vector.load %arg11[%c0_22, %c0_23] : memref<1x32xf32, #tpu.memory_space<vmem>>, vector<1x32xf32>
    %34 = arith.addf %32, %33 : vector<1x32xf32>
    %c0_24 = arith.constant 0 : index
    %c0_25 = arith.constant 0 : index
    %35 = vector.load %arg12[%c0_24, %c0_25] : memref<32x32xf32, #tpu.memory_space<vmem>>, vector<32x32xf32>
    %cst_26 = arith.constant dense<0.000000e+00> : vector<1x32xf32>
    %36 = tpu.matmul %24, %35, %cst_26 {dimension_numbers = #tpu.dot_dimension_numbers<[1], [0], [0], [1], [0, 0, 1, 1], [], []>} : vector<1x32xf32>, vector<32x32xf32>, vector<1x32xf32> -> vector<1x32xf32>
    %c0_27 = arith.constant 0 : index
    %c0_28 = arith.constant 0 : index
    %37 = vector.load %arg13[%c0_27, %c0_28] : memref<1x32xf32, #tpu.memory_space<vmem>>, vector<1x32xf32>
    %38 = arith.addf %36, %37 : vector<1x32xf32>
    %39 = arith.mulf %34, %30 : vector<1x32xf32>
    %cst_29 = arith.constant dense<0.000000e+00> : vector<1x4xf32>
    %40 = tpu.matmul %39, %2, %cst_29 {dimension_numbers = #tpu.dot_dimension_numbers<[1], [0], [0], [1], [0, 0, 1, 1], [], []>} : vector<1x32xf32>, vector<32x4xf32>, vector<1x4xf32> -> vector<1x4xf32>
    %c0_30 = arith.constant 0 : index
    %c0_31 = arith.constant 0 : index
    %c0_32 = arith.constant 0 : index
    %41 = vector.load %arg2[%c0_30, %c0_31, %c0_32] : memref<2x8x32xf32, #tpu.memory_space<vmem>>, vector<2x8x32xf32>
    %42 = vector.shape_cast %41 : vector<2x8x32xf32> to vector<16x32xf32>
    %cst_33 = arith.constant dense<0.000000e+00> : vector<16xf32>
    %43 = vector.multi_reduction <add>, %42, %cst_33 [1] : vector<16x32xf32> to vector<16xf32>
    %44 = vector.shape_cast %43 : vector<16xf32> to vector<16x1xf32>
    %cst_34 = arith.constant 3.200000e+01 : f32
    %45 = vector.broadcast %cst_34 : f32 to vector<16x1xf32>
    %46 = arith.divf %44, %45 : vector<16x1xf32>
    %47 = vector.broadcast %46 : vector<16x1xf32> to vector<16x32xf32>
    %48 = arith.subf %42, %47 : vector<16x32xf32>
    %49 = arith.mulf %48, %48 : vector<16x32xf32>
    %cst_35 = arith.constant dense<0.000000e+00> : vector<16xf32>
    %50 = vector.multi_reduction <add>, %49, %cst_35 [1] : vector<16x32xf32> to vector<16xf32>
    %51 = vector.shape_cast %50 : vector<16xf32> to vector<16x1xf32>
    %cst_36 = arith.constant 3.200000e+01 : f32
    %52 = vector.broadcast %cst_36 : f32 to vector<16x1xf32>
    %53 = arith.divf %51, %52 : vector<16x1xf32>
    %54 = vector.broadcast %46 : vector<16x1xf32> to vector<16x32xf32>
    %55 = arith.subf %42, %54 : vector<16x32xf32>
    %cst_37 = arith.constant 9.99999997E-7 : f32
    %56 = vector.broadcast %cst_37 : f32 to vector<16x1xf32>
    %57 = arith.addf %53, %56 : vector<16x1xf32>
    %58 = math.rsqrt %57 : vector<16x1xf32>
    %59 = vector.broadcast %58 : vector<16x1xf32> to vector<16x32xf32>
    %60 = arith.mulf %55, %59 : vector<16x32xf32>
    %61 = vector.broadcast %0 : vector<1x32xf32> to vector<16x32xf32>
    %62 = arith.mulf %60, %61 : vector<16x32xf32>
    %63 = vector.broadcast %1 : vector<1x32xf32> to vector<16x32xf32>
    %64 = arith.addf %62, %63 : vector<16x32xf32>
    %c0_38 = arith.constant 0 : index
    %c0_39 = arith.constant 0 : index
    %65 = vector.load %arg10[%c0_38, %c0_39] : memref<32x32xf32, #tpu.memory_space<vmem>>, vector<32x32xf32>
    %cst_40 = arith.constant dense<0.000000e+00> : vector<16x32xf32>
    %66 = tpu.matmul %64, %65, %cst_40 {dimension_numbers = #tpu.dot_dimension_numbers<[1], [0], [0], [1], [0, 0, 1, 1], [], []>} : vector<16x32xf32>, vector<32x32xf32>, vector<16x32xf32> -> vector<16x32xf32>
    %c0_41 = arith.constant 0 : index
    %c0_42 = arith.constant 0 : index
    %67 = vector.load %arg11[%c0_41, %c0_42] : memref<1x32xf32, #tpu.memory_space<vmem>>, vector<1x32xf32>
    %68 = vector.broadcast %67 : vector<1x32xf32> to vector<16x32xf32>
    %69 = arith.addf %66, %68 : vector<16x32xf32>
    %c0_43 = arith.constant 0 : index
    %c0_44 = arith.constant 0 : index
    %70 = vector.load %arg12[%c0_43, %c0_44] : memref<32x32xf32, #tpu.memory_space<vmem>>, vector<32x32xf32>
    %cst_45 = arith.constant dense<0.000000e+00> : vector<16x32xf32>
    %71 = tpu.matmul %64, %70, %cst_45 {dimension_numbers = #tpu.dot_dimension_numbers<[1], [0], [0], [1], [0, 0, 1, 1], [], []>} : vector<16x32xf32>, vector<32x32xf32>, vector<16x32xf32> -> vector<16x32xf32>
    %c0_46 = arith.constant 0 : index
    %c0_47 = arith.constant 0 : index
    %72 = vector.load %arg13[%c0_46, %c0_47] : memref<1x32xf32, #tpu.memory_space<vmem>>, vector<1x32xf32>
    %73 = vector.broadcast %72 : vector<1x32xf32> to vector<16x32xf32>
    %74 = arith.addf %71, %73 : vector<16x32xf32>
    %75 = vector.broadcast %30 : vector<1x32xf32> to vector<16x32xf32>
    %76 = arith.mulf %69, %75 : vector<16x32xf32>
    %cst_48 = arith.constant dense<0.000000e+00> : vector<16x4xf32>
    %77 = tpu.matmul %76, %2, %cst_48 {dimension_numbers = #tpu.dot_dimension_numbers<[1], [0], [0], [1], [0, 0, 1, 1], [], []>} : vector<16x32xf32>, vector<32x4xf32>, vector<16x4xf32> -> vector<16x4xf32>
    %78 = vector.shape_cast %77 : vector<16x4xf32> to vector<2x8x4xf32>
    %79 = tpu.iota {dimensions = array<i32: 1>} : vector<2x8x1xi32>
    %c0_49 = arith.constant 0 : index
    %c0_50 = arith.constant 0 : index
    %80 = vector.load %arg1[%c0_49, %c0_50] : memref<2x1xi32, #tpu.memory_space<vmem>>, vector<2x1xi32>
    %81 = vector.shape_cast %80 : vector<2x1xi32> to vector<2x1x1xi32>
    %82 = vector.broadcast %81 : vector<2x1x1xi32> to vector<2x8x1xi32>
    %83 = arith.cmpi slt, %79, %82 : vector<2x8x1xi32>
    %cst_51 = arith.constant -9.99999984E+17 : f32
    %84 = vector.shape_cast %83 : vector<2x8x1xi1> to vector<2x8x1xi1>
    %85 = vector.broadcast %84 : vector<2x8x1xi1> to vector<2x8x4xi1>
    %86 = vector.broadcast %cst_51 : f32 to vector<2x8x4xf32>
    %87 = arith.select %85, %78, %86 : vector<2x8x4xi1>, vector<2x8x4xf32>
    %cst_52 = arith.constant dense<0xFF800000> : vector<2x4xf32>
    %88 = vector.multi_reduction <maximumf>, %87, %cst_52 [1] : vector<2x8x4xf32> to vector<2x4xf32>
    %89 = vector.broadcast %40 : vector<1x4xf32> to vector<2x4xf32>
    %90 = arith.maximumf %88, %89 : vector<2x4xf32>
    %91 = vector.shape_cast %90 : vector<2x4xf32> to vector<2x1x4xf32>
    %92 = vector.broadcast %91 : vector<2x1x4xf32> to vector<2x8x4xf32>
    %93 = arith.subf %87, %92 : vector<2x8x4xf32>
    %94 = math.exp %93 : vector<2x8x4xf32>
    %95 = vector.broadcast %40 : vector<1x4xf32> to vector<2x4xf32>
    %96 = arith.subf %95, %90 : vector<2x4xf32>
    %97 = math.exp %96 : vector<2x4xf32>
    %cst_53 = arith.constant dense<0.000000e+00> : vector<2x4xf32>
    %98 = vector.multi_reduction <add>, %94, %cst_53 [1] : vector<2x8x4xf32> to vector<2x4xf32>
    %99 = arith.addf %97, %98 : vector<2x4xf32>
    %100 = vector.shape_cast %94 : vector<2x8x4xf32> to vector<16x4xf32>
    %cst_54 = arith.constant dense<0.000000e+00> : vector<16x32xf32>
    %101 = tpu.matmul %100, %3, %cst_54 {dimension_numbers = #tpu.dot_dimension_numbers<[1], [0], [0], [1], [0, 0, 1, 1], [], []>} : vector<16x4xf32>, vector<4x32xf32>, vector<16x32xf32> -> vector<16x32xf32>
    %102 = vector.shape_cast %101 : vector<16x32xf32> to vector<2x8x32xf32>
    %cst_55 = arith.constant dense<0.000000e+00> : vector<2x32xf32>
    %103 = tpu.matmul %97, %3, %cst_55 {dimension_numbers = #tpu.dot_dimension_numbers<[1], [0], [0], [1], [0, 0, 1, 1], [], []>} : vector<2x4xf32>, vector<4x32xf32>, vector<2x32xf32> -> vector<2x32xf32>
    %cst_56 = arith.constant 1.000000e+00 : f32
    %104 = vector.broadcast %cst_56 : f32 to vector<2x4xf32>
    %105 = arith.divf %104, %99 : vector<2x4xf32>
    %cst_57 = arith.constant dense<0.000000e+00> : vector<2x32xf32>
    %106 = tpu.matmul %105, %3, %cst_57 {dimension_numbers = #tpu.dot_dimension_numbers<[1], [0], [0], [1], [0, 0, 1, 1], [], []>} : vector<2x4xf32>, vector<4x32xf32>, vector<2x32xf32> -> vector<2x32xf32>
    %107 = vector.shape_cast %74 : vector<16x32xf32> to vector<2x8x32xf32>
    %108 = vector.broadcast %38 : vector<1x32xf32> to vector<2x32xf32>
    %109 = arith.mulf %103, %108 : vector<2x32xf32>
    %110 = arith.mulf %102, %107 : vector<2x8x32xf32>
    %cst_58 = arith.constant dense<0.000000e+00> : vector<2x32xf32>
    %111 = vector.multi_reduction <add>, %110, %cst_58 [1] : vector<2x8x32xf32> to vector<2x32xf32>
    %112 = arith.addf %109, %111 : vector<2x32xf32>
    %113 = arith.mulf %112, %106 : vector<2x32xf32>
    %c0_59 = arith.constant 0 : index
    %c0_60 = arith.constant 0 : index
    %114 = vector.load %arg14[%c0_59, %c0_60] : memref<32x32xf32, #tpu.memory_space<vmem>>, vector<32x32xf32>
    %cst_61 = arith.constant dense<0.000000e+00> : vector<2x32xf32>
    %115 = tpu.matmul %113, %114, %cst_61 {dimension_numbers = #tpu.dot_dimension_numbers<[1], [0], [0], [1], [0, 0, 1, 1], [], []>} : vector<2x32xf32>, vector<32x32xf32>, vector<2x32xf32> -> vector<2x32xf32>
    %c0_62 = arith.constant 0 : index
    %c0_63 = arith.constant 0 : index
    %116 = vector.load %arg15[%c0_62, %c0_63] : memref<1x32xf32, #tpu.memory_space<vmem>>, vector<1x32xf32>
    %117 = vector.broadcast %116 : vector<1x32xf32> to vector<2x32xf32>
    %118 = arith.addf %115, %117 : vector<2x32xf32>
    %119 = vector.broadcast %4 : vector<1x32xf32> to vector<2x32xf32>
    %120 = arith.addf %118, %119 : vector<2x32xf32>
    %c0_64 = arith.constant 0 : index
    %c0_65 = arith.constant 0 : index
    %121 = vector.load %arg16[%c0_64, %c0_65] : memref<1x32xf32, #tpu.memory_space<vmem>>, vector<1x32xf32>
    %c0_66 = arith.constant 0 : index
    %c0_67 = arith.constant 0 : index
    %122 = vector.load %arg17[%c0_66, %c0_67] : memref<1x32xf32, #tpu.memory_space<vmem>>, vector<1x32xf32>
    %cst_68 = arith.constant dense<0.000000e+00> : vector<2xf32>
    %123 = vector.multi_reduction <add>, %120, %cst_68 [1] : vector<2x32xf32> to vector<2xf32>
    %124 = vector.shape_cast %123 : vector<2xf32> to vector<2x1xf32>
    %cst_69 = arith.constant 3.200000e+01 : f32
    %125 = vector.broadcast %cst_69 : f32 to vector<2x1xf32>
    %126 = arith.divf %124, %125 : vector<2x1xf32>
    %127 = vector.broadcast %126 : vector<2x1xf32> to vector<2x32xf32>
    %128 = arith.subf %120, %127 : vector<2x32xf32>
    %129 = arith.mulf %128, %128 : vector<2x32xf32>
    %cst_70 = arith.constant dense<0.000000e+00> : vector<2xf32>
    %130 = vector.multi_reduction <add>, %129, %cst_70 [1] : vector<2x32xf32> to vector<2xf32>
    %131 = vector.shape_cast %130 : vector<2xf32> to vector<2x1xf32>
    %cst_71 = arith.constant 3.200000e+01 : f32
    %132 = vector.broadcast %cst_71 : f32 to vector<2x1xf32>
    %133 = arith.divf %131, %132 : vector<2x1xf32>
    %134 = vector.broadcast %126 : vector<2x1xf32> to vector<2x32xf32>
    %135 = arith.subf %120, %134 : vector<2x32xf32>
    %cst_72 = arith.constant 9.99999997E-7 : f32
    %136 = vector.broadcast %cst_72 : f32 to vector<2x1xf32>
    %137 = arith.addf %133, %136 : vector<2x1xf32>
    %138 = math.rsqrt %137 : vector<2x1xf32>
    %139 = vector.broadcast %138 : vector<2x1xf32> to vector<2x32xf32>
    %140 = arith.mulf %135, %139 : vector<2x32xf32>
    %141 = vector.broadcast %121 : vector<1x32xf32> to vector<2x32xf32>
    %142 = arith.mulf %140, %141 : vector<2x32xf32>
    %143 = vector.broadcast %122 : vector<1x32xf32> to vector<2x32xf32>
    %144 = arith.addf %142, %143 : vector<2x32xf32>
    %c0_73 = arith.constant 0 : index
    %c0_74 = arith.constant 0 : index
    %145 = vector.load %arg18[%c0_73, %c0_74] : memref<32x64xf32, #tpu.memory_space<vmem>>, vector<32x64xf32>
    %cst_75 = arith.constant dense<0.000000e+00> : vector<2x64xf32>
    %146 = tpu.matmul %144, %145, %cst_75 {dimension_numbers = #tpu.dot_dimension_numbers<[1], [0], [0], [1], [0, 0, 1, 1], [], []>} : vector<2x32xf32>, vector<32x64xf32>, vector<2x64xf32> -> vector<2x64xf32>
    %c0_76 = arith.constant 0 : index
    %c0_77 = arith.constant 0 : index
    %147 = vector.load %arg19[%c0_76, %c0_77] : memref<1x64xf32, #tpu.memory_space<vmem>>, vector<1x64xf32>
    %148 = vector.broadcast %147 : vector<1x64xf32> to vector<2x64xf32>
    %149 = arith.addf %146, %148 : vector<2x64xf32>
    %cst_78 = arith.constant 0.000000e+00 : f32
    %150 = vector.broadcast %cst_78 : f32 to vector<2x64xf32>
    %151 = arith.maximumf %149, %150 : vector<2x64xf32>
    %c0_79 = arith.constant 0 : index
    %c0_80 = arith.constant 0 : index
    %152 = vector.load %arg20[%c0_79, %c0_80] : memref<64x32xf32, #tpu.memory_space<vmem>>, vector<64x32xf32>
    %cst_81 = arith.constant dense<0.000000e+00> : vector<2x32xf32>
    %153 = tpu.matmul %151, %152, %cst_81 {dimension_numbers = #tpu.dot_dimension_numbers<[1], [0], [0], [1], [0, 0, 1, 1], [], []>} : vector<2x64xf32>, vector<64x32xf32>, vector<2x32xf32> -> vector<2x32xf32>
    %c0_82 = arith.constant 0 : index
    %c0_83 = arith.constant 0 : index
    %154 = vector.load %arg21[%c0_82, %c0_83] : memref<1x32xf32, #tpu.memory_space<vmem>>, vector<1x32xf32>
    %155 = vector.broadcast %154 : vector<1x32xf32> to vector<2x32xf32>
    %156 = arith.addf %153, %155 : vector<2x32xf32>
    %157 = arith.addf %156, %120 : vector<2x32xf32>
    %c0_84 = arith.constant 0 : index
    %c0_85 = arith.constant 0 : index
    %158 = vector.load %arg22[%c0_84, %c0_85] : memref<2x32xf32, #tpu.memory_space<vmem>>, vector<2x32xf32>
    tpu.vector_store %arg22[%c0_84, %c0_85], %157 {strides = array<i32>} : memref<2x32xf32, #tpu.memory_space<vmem>>, vector<2x32xf32>,
    return
  }
  func.func @transform_0(%arg0: i32) -> (i32, i32) {
    %c0_i32 = arith.constant 0 : i32
    %c0_i32_0 = arith.constant 0 : i32
    return %arg0, %c0_i32 : i32, i32
  }
  func.func @transform_1(%arg0: i32) -> (i32, i32, i32) {
    %c0_i32 = arith.constant 0 : i32
    %c0_i32_0 = arith.constant 0 : i32
    %c0_i32_1 = arith.constant 0 : i32
    return %arg0, %c0_i32, %c0_i32_0 : i32, i32, i32
  }
  func.func @transform_2(%arg0: i32) -> (i32, i32) {
    %c0_i32 = arith.constant 0 : i32
    %c0_i32_0 = arith.constant 0 : i32
    %c0_i32_1 = arith.constant 0 : i32
    return %c0_i32, %c0_i32_0 : i32, i32
  }
  func.func @transform_3(%arg0: i32) -> (i32, i32) {
    %c0_i32 = arith.constant 0 : i32
    %c0_i32_0 = arith.constant 0 : i32
    %c0_i32_1 = arith.constant 0 : i32
    return %c0_i32, %c0_i32_0 : i32, i32
  }
  func.func @transform_4(%arg0: i32) -> (i32, i32) {
    %c0_i32 = arith.constant 0 : i32
    %c0_i32_0 = arith.constant 0 : i32
    %c0_i32_1 = arith.constant 0 : i32
    return %c0_i32, %c0_i32_0 : i32, i32
  }
  func.func @transform_5(%arg0: i32) -> (i32, i32) {
    %c0_i32 = arith.constant 0 : i32
    %c0_i32_0 = arith.constant 0 : i32
    %c0_i32_1 = arith.constant 0 : i32
    return %c0_i32, %c0_i32_0 : i32, i32
  }
  func.func @transform_6(%arg0: i32) -> (i32, i32) {
    %c0_i32 = arith.constant 0 : i32
    %c0_i32_0 = arith.constant 0 : i32
    %c0_i32_1 = arith.constant 0 : i32
    return %c0_i32, %c0_i32_0 : i32, i32
  }
  func.func @transform_7(%arg0: i32) -> (i32, i32) {
    %c0_i32 = arith.constant 0 : i32
    %c0_i32_0 = arith.constant 0 : i32
    %c0_i32_1 = arith.constant 0 : i32
    return %c0_i32, %c0_i32_0 : i32, i32
  }
  func.func @transform_8(%arg0: i32) -> (i32, i32) {
    %c0_i32 = arith.constant 0 : i32
    %c0_i32_0 = arith.constant 0 : i32
    %c0_i32_1 = arith.constant 0 : i32
    return %c0_i32, %c0_i32_0 : i32, i32
  }
  func.func @transform_9(%arg0: i32) -> (i32, i32) {
    %c0_i32 = arith.constant 0 : i32
    %c0_i32_0 = arith.constant 0 : i32
    %c0_i32_1 = arith.constant 0 : i32
    return %c0_i32, %c0_i32_0 : i32, i32
  }
  func.func @transform_10(%arg0: i32) -> (i32, i32) {
    %c0_i32 = arith.constant 0 : i32
    %c0_i32_0 = arith.constant 0 : i32
    %c0_i32_1 = arith.constant 0 : i32
    return %c0_i32, %c0_i32_0 : i32, i32
  }
  func.func @transform_11(%arg0: i32) -> (i32, i32) {
    %c0_i32 = arith.constant 0 : i32
    %c0_i32_0 = arith.constant 0 : i32
    %c0_i32_1 = arith.constant 0 : i32
    return %c0_i32, %c0_i32_0 : i32, i32
  }
  func.func @transform_12(%arg0: i32) -> (i32, i32) {
    %c0_i32 = arith.constant 0 : i32
    %c0_i32_0 = arith.constant 0 : i32
    %c0_i32_1 = arith.constant 0 : i32
    return %c0_i32, %c0_i32_0 : i32, i32
  }
  func.func @transform_13(%arg0: i32) -> (i32, i32) {
    %c0_i32 = arith.constant 0 : i32
    %c0_i32_0 = arith.constant 0 : i32
    %c0_i32_1 = arith.constant 0 : i32
    return %c0_i32, %c0_i32_0 : i32, i32
  }
  func.func @transform_14(%arg0: i32) -> (i32, i32) {
    %c0_i32 = arith.constant 0 : i32
    %c0_i32_0 = arith.constant 0 : i32
    %c0_i32_1 = arith.constant 0 : i32
    return %c0_i32, %c0_i32_0 : i32, i32
  }
  func.func @transform_15(%arg0: i32) -> (i32, i32) {
    %c0_i32 = arith.constant 0 : i32
    %c0_i32_0 = arith.constant 0 : i32
    %c0_i32_1 = arith.constant 0 : i32
    return %c0_i32, %c0_i32_0 : i32, i32
  }
  func.func @transform_16(%arg0: i32) -> (i32, i32) {
    %c0_i32 = arith.constant 0 : i32
    %c0_i32_0 = arith.constant 0 : i32
    %c0_i32_1 = arith.constant 0 : i32
    return %c0_i32, %c0_i32_0 : i32, i32
  }
  func.func @transform_17(%arg0: i32) -> (i32, i32) {
    %c0_i32 = arith.constant 0 : i32
    %c0_i32_0 = arith.constant 0 : i32
    %c0_i32_1 = arith.constant 0 : i32
    return %c0_i32, %c0_i32_0 : i32, i32
  }
  func.func @transform_18(%arg0: i32) -> (i32, i32) {
    %c0_i32 = arith.constant 0 : i32
    %c0_i32_0 = arith.constant 0 : i32
    %c0_i32_1 = arith.constant 0 : i32
    return %c0_i32, %c0_i32_0 : i32, i32
  }
  func.func @transform_19(%arg0: i32) -> (i32, i32) {
    %c0_i32 = arith.constant 0 : i32
    %c0_i32_0 = arith.constant 0 : i32
    %c0_i32_1 = arith.constant 0 : i32
    return %c0_i32, %c0_i32_0 : i32, i32
  }
  func.func @transform_20(%arg0: i32) -> (i32, i32) {
    %c0_i32 = arith.constant 0 : i32
    %c0_i32_0 = arith.constant 0 : i32
    %c0_i32_1 = arith.constant 0 : i32
    return %c0_i32, %c0_i32_0 : i32, i32
  }
  func.func @transform_21(%arg0: i32) -> (i32, i32) {
    %c0_i32 = arith.constant 0 : i32
    %c0_i32_0 = arith.constant 0 : i32
    return %arg0, %c0_i32 : i32, i32
  }
}

</mosaic_0001>

<llo_original>
// kernel: tpu_custom_call.1
$region0: #{tpu_custom_call.1}
  #allocation0 [shape = 'u32[]', space=smem, size = 0x4, offset = 0x4, fixed_abs, tag = 'smem constant byte address 0x4 - core index']
  #allocation1 [shape = 'u32[144,128]{1,0:T(1,128)}', space=vmem, size = 0x12000, scoped, tag = 'internal scratch']
  %s0 = inlined_call_operand.vmem [shape: s32[2,1], index: 0, kind: input, shape index: {}]
  %s1 = inlined_call_operand.hbm [shape: f32[2,8,32], index: 1, kind: input, shape index: {}]
  %s2 = inlined_call_operand.hbm [shape: f32[1,32], index: 2, kind: input, shape index: {}]
  %s3 = inlined_call_operand.vmem [shape: f32[32,4], index: 3, kind: input, shape index: {}]
  %s4 = inlined_call_operand.hbm [shape: f32[4,32], index: 4, kind: input, shape index: {}]
  %s5 = inlined_call_operand.hbm [shape: f32[1,32], index: 5, kind: input, shape index: {}]
  %s6 = inlined_call_operand.hbm [shape: f32[1,32], index: 6, kind: input, shape index: {}]
  %s7 = inlined_call_operand.vmem [shape: f32[32,32], index: 7, kind: input, shape index: {}]
  %s8 = inlined_call_operand.hbm [shape: f32[1,32], index: 8, kind: input, shape index: {}]
  %s9 = inlined_call_operand.vmem [shape: f32[32,32], index: 9, kind: input, shape index: {}]
  %s10 = inlined_call_operand.hbm [shape: f32[1,32], index: 10, kind: input, shape index: {}]
  %s11 = inlined_call_operand.vmem [shape: f32[32,32], index: 11, kind: input, shape index: {}]
  %s12 = inlined_call_operand.hbm [shape: f32[1,32], index: 12, kind: input, shape index: {}]
  %s13 = inlined_call_operand.vmem [shape: f32[32,32], index: 13, kind: input, shape index: {}]
  %s14 = inlined_call_operand.hbm [shape: f32[1,32], index: 14, kind: input, shape index: {}]
  %s15 = inlined_call_operand.hbm [shape: f32[1,32], index: 15, kind: input, shape index: {}]
  %s16 = inlined_call_operand.vmem [shape: f32[1,32], index: 16, kind: input, shape index: {}]
  %s17 = inlined_call_operand.vmem [shape: f32[32,64], index: 17, kind: input, shape index: {}]
  %s18 = inlined_call_operand.vmem [shape: f32[1,64], index: 18, kind: input, shape index: {}]
  %s19 = inlined_call_operand.vmem [shape: f32[64,32], index: 19, kind: input, shape index: {}]
  %s20 = inlined_call_operand.vmem [shape: f32[1,32], index: 20, kind: input, shape index: {}]
  %s21 = inlined_call_operand.hbm [shape: f32[2,32], index: 21, kind: output, shape index: {}]
  %s22 = sld [smem:[#allocation0]]
  $region134: #{tpu_custom_call.1} parent=0
    _
  %s24 = ssub.s32 1, %s22
  %s25 = scalar_select 0, %s24, %s22
  $region1: #{tpu_custom_call.1} parent=0
    #allocation2 [shape = 'u8[8192]{0}', space=vmem, size = 0x2000, scoped, tag = 'input window, operand 1, single buffered']
    #allocation3 [shape = 's32[1]{0}', space=sflag, size = 0x4, scoped, tag = 'scoped memory for tpu_custom_call.1']
    #allocation4 [shape = 's32[1]{0}', space=sflag, size = 0x4, scoped, tag = 'scoped memory for tpu_custom_call.1']
    #allocation5 [shape = 'u8[512]{0}', space=vmem, size = 0x400, scoped, tag = 'input window, operand 2, single buffered']
    #allocation6 [shape = 's32[1]{0}', space=sflag, size = 0x4, scoped, tag = 'scoped memory for tpu_custom_call.1']
    #allocation7 [shape = 'u8[2048]{0}', space=vmem, size = 0x800, scoped, tag = 'input window, operand 4, single buffered']
    #allocation8 [shape = 'u8[512]{0}', space=vmem, size = 0x400, scoped, tag = 'input window, operand 5, single buffered']
    #allocation9 [shape = 's32[1]{0}', space=sflag, size = 0x4, scoped, tag = 'scoped memory for tpu_custom_call.1']
    #allocation10 [shape = 'u8[512]{0}', space=vmem, size = 0x400, scoped, tag = 'input window, operand 6, single buffered']
    #allocation11 [shape = 'u8[512]{0}', space=vmem, size = 0x400, scoped, tag = 'input window, operand 8, single buffered']
    #allocation12 [shape = 's32[1]{0}', space=sflag, size = 0x4, scoped, tag = 'scoped memory for tpu_custom_call.1']
    #allocation13 [shape = 'u8[512]{0}', space=vmem, size = 0x400, scoped, tag = 'input window, operand 10, single buffered']
    #allocation14 [shape = 'u8[512]{0}', space=vmem, size = 0x400, scoped, tag = 'input window, operand 12, single buffered']
    #allocation15 [shape = 's32[1]{0}', space=sflag, size = 0x4, scoped, tag = 'scoped memory for tpu_custom_call.1']
    #allocation16 [shape = 'u8[512]{0}', space=vmem, size = 0x400, scoped, tag = 'input window, operand 14, single buffered']
    #allocation17 [shape = 'u8[512]{0}', space=vmem, size = 0x400, scoped, tag = 'input window, operand 15, single buffered']
    #allocation18 [shape = 's32[1]{0}', space=sflag, size = 0x4, scoped, tag = 'scoped memory for tpu_custom_call.1']
    #allocation19 [shape = 'u8[1024]{0}', space=vmem, size = 0x400, scoped, tag = 'output window, operand 0, single buffered']
    %26 = vsyncpa [#allocation3], 0
    %27 = vsyncpa [#allocation6], 0
    %28 = vsyncpa [#allocation9], 0
    %29 = vsyncpa [#allocation12], 0
    %30 = vsyncpa [#allocation15], 0
    %31 = vsyncpa [#allocation18], 0
    %32 = vsyncpa [#allocation4], 0
    // Predicated region
    $region2: #{tpu_custom_call.1} parent=1 // pred_check
      _
    $region3: #{tpu_custom_call.1} parent=1 // pred_check_branch
      %34 = sbr.rel (0) target = $region5
    $region4: #{tpu_custom_call.1} parent=1 // pred_region
      _
    $region5: #{tpu_custom_call.1} parent=1 // pred_fallthru
      _
    // Predicated region
    $region6: #{tpu_custom_call.1} parent=1 // pred_check
      _
    $region7: #{tpu_custom_call.1} parent=1 // pred_check_branch
      %36 = sbr.rel (0) target = $region9
    $region8: #{tpu_custom_call.1} parent=1 // pred_region
      %s38 = ssub.s32 256, 256
      %39 = vsyncadd [#allocation3], %s38
      %s40 = sshll.u32 [#allocation2], 4
      %s41 = int_to_ptr.vmem [resolvable:$true] %s40
      %46 = dma.hbm_to_vmem [thread:$0]  %s1, 256, %s41, [#allocation3], 128, 128, 8
    $region9: #{tpu_custom_call.1} parent=1 // pred_fallthru
      _
    // Predicated region
    $region10: #{tpu_custom_call.1} parent=1 // pred_check
      _
    $region11: #{tpu_custom_call.1} parent=1 // pred_check_branch
      %48 = sbr.rel (0) target = $region13
    $region12: #{tpu_custom_call.1} parent=1 // pred_region
      %s50 = ssub.s32 16, 16
      %51 = vsyncadd [#allocation6], %s50
      %s53 = sshll.u32 [#allocation5], 4
      %s54 = int_to_ptr.vmem [resolvable:$true] %s53
      %56 = dma.hbm_to_vmem [thread:$0]  %s2, 16, %s54, [#allocation6]
    $region13: #{tpu_custom_call.1} parent=1 // pred_fallthru
      _
    // Predicated region
    $region14: #{tpu_custom_call.1} parent=1 // pred_check
      _
    $region15: #{tpu_custom_call.1} parent=1 // pred_check_branch
      %58 = sbr.rel (0) target = $region17
    $region16: #{tpu_custom_call.1} parent=1 // pred_region
      _
    $region17: #{tpu_custom_call.1} parent=1 // pred_fallthru
      _
    // Predicated region
    $region18: #{tpu_custom_call.1} parent=1 // pred_check
      _
    $region19: #{tpu_custom_call.1} parent=1 // pred_check_branch
      %60 = sbr.rel (0) target = $region21
    $region20: #{tpu_custom_call.1} parent=1 // pred_region
      %s62 = ssub.s32 64, 64
      %63 = vsyncadd [#allocation6], %s62
      %s65 = sshll.u32 [#allocation7], 4
      %s66 = int_to_ptr.vmem [resolvable:$true] %s65
      %68 = dma.hbm_to_vmem [thread:$0]  %s4, 64, %s66, [#allocation6]
    $region21: #{tpu_custom_call.1} parent=1 // pred_fallthru
      _
    // Predicated region
    $region22: #{tpu_custom_call.1} parent=1 // pred_check
      _
    $region23: #{tpu_custom_call.1} parent=1 // pred_check_branch
      %70 = sbr.rel (0) target = $region25
    $region24: #{tpu_custom_call.1} parent=1 // pred_region
      %s72 = ssub.s32 16, 16
      %73 = vsyncadd [#allocation9], %s72
      %s75 = sshll.u32 [#allocation8], 4
      %s76 = int_to_ptr.vmem [resolvable:$true] %s75
      %78 = dma.hbm_to_vmem [thread:$0]  %s5, 16, %s76, [#allocation9]
    $region25: #{tpu_custom_call.1} parent=1 // pred_fallthru
      _
    // Predicated region
    $region26: #{tpu_custom_call.1} parent=1 // pred_check
      _
    $region27: #{tpu_custom_call.1} parent=1 // pred_check_branch
      %80 = sbr.rel (0) target = $region29
    $region28: #{tpu_custom_call.1} parent=1 // pred_region
      %s82 = ssub.s32 16, 16
      %83 = vsyncadd [#allocation9], %s82
      %s85 = sshll.u32 [#allocation10], 4
      %s86 = int_to_ptr.vmem [resolvable:$true] %s85
      %88 = dma.hbm_to_vmem [thread:$0]  %s6, 16, %s86, [#allocation9]
    $region29: #{tpu_custom_call.1} parent=1 // pred_fallthru
      _
    // Predicated region
    $region30: #{tpu_custom_call.1} parent=1 // pred_check
      _
    $region31: #{tpu_custom_call.1} parent=1 // pred_check_branch
      %90 = sbr.rel (0) target = $region33
    $region32: #{tpu_custom_call.1} parent=1 // pred_region
      _
    $region33: #{tpu_custom_call.1} parent=1 // pred_fallthru
      _
    // Predicated region
    $region34: #{tpu_custom_call.1} parent=1 // pred_check
      _
    $region35: #{tpu_custom_call.1} parent=1 // pred_check_branch
      %92 = sbr.rel (0) target = $region37
    $region36: #{tpu_custom_call.1} parent=1 // pred_region
      %s94 = ssub.s32 16, 16
      %95 = vsyncadd [#allocation12], %s94
      %s97 = sshll.u32 [#allocation11], 4
      %s98 = int_to_ptr.vmem [resolvable:$true] %s97
      %100 = dma.hbm_to_vmem [thread:$0]  %s8, 16, %s98, [#allocation12]
    $region37: #{tpu_custom_call.1} parent=1 // pred_fallthru
      _
    // Predicated region
    $region38: #{tpu_custom_call.1} parent=1 // pred_check
      _
    $region39: #{tpu_custom_call.1} parent=1 // pred_check_branch
      %102 = sbr.rel (0) target = $region41
    $region40: #{tpu_custom_call.1} parent=1 // pred_region
      _
    $region41: #{tpu_custom_call.1} parent=1 // pred_fallthru
      _
    // Predicated region
    $region42: #{tpu_custom_call.1} parent=1 // pred_check
      _
    $region43: #{tpu_custom_call.1} parent=1 // pred_check_branch
      %104 = sbr.rel (0) target = $region45
    $region44: #{tpu_custom_call.1} parent=1 // pred_region
      %s106 = ssub.s32 16, 16
      %107 = vsyncadd [#allocation12], %s106
      %s109 = sshll.u32 [#allocation13], 4
      %s110 = int_to_ptr.vmem [resolvable:$true] %s109
      %112 = dma.hbm_to_vmem [thread:$0]  %s10, 16, %s110, [#allocation12]
    $region45: #{tpu_custom_call.1} parent=1 // pred_fallthru
      _
    // Predicated region
    $region46: #{tpu_custom_call.1} parent=1 // pred_check
      _
    $region47: #{tpu_custom_call.1} parent=1 // pred_check_branch
      %114 = sbr.rel (0) target = $region49
    $region48: #{tpu_custom_call.1} parent=1 // pred_region
      _
    $region49: #{tpu_custom_call.1} parent=1 // pred_fallthru
      _
    // Predicated region
    $region50: #{tpu_custom_call.1} parent=1 // pred_check
      _
    $region51: #{tpu_custom_call.1} parent=1 // pred_check_branch
      %116 = sbr.rel (0) target = $region53
    $region52: #{tpu_custom_call.1} parent=1 // pred_region
      %s118 = ssub.s32 16, 16
      %119 = vsyncadd [#allocation15], %s118
      %s121 = sshll.u32 [#allocation14], 4
      %s122 = int_to_ptr.vmem [resolvable:$true] %s121
      %124 = dma.hbm_to_vmem [thread:$0]  %s12, 16, %s122, [#allocation15]
    $region53: #{tpu_custom_call.1} parent=1 // pred_fallthru
      _
    // Predicated region
    $region54: #{tpu_custom_call.1} parent=1 // pred_check
      _
    $region55: #{tpu_custom_call.1} parent=1 // pred_check_branch
      %126 = sbr.rel (0) target = $region57
    $region56: #{tpu_custom_call.1} parent=1 // pred_region
      _
    $region57: #{tpu_custom_call.1} parent=1 // pred_fallthru
      _
    // Predicated region
    $region58: #{tpu_custom_call.1} parent=1 // pred_check
      _
    $region59: #{tpu_custom_call.1} parent=1 // pred_check_branch
      %128 = sbr.rel (0) target = $region61
    $region60: #{tpu_custom_call.1} parent=1 // pred_region
      %s130 = ssub.s32 16, 16
      %131 = vsyncadd [#allocation15], %s130
      %s133 = sshll.u32 [#allocation16], 4
      %s134 = int_to_ptr.vmem [resolvable:$true] %s133
      %136 = dma.hbm_to_vmem [thread:$0]  %s14, 16, %s134, [#allocation15]
    $region61: #{tpu_custom_call.1} parent=1 // pred_fallthru
      _
    // Predicated region
    $region62: #{tpu_custom_call.1} parent=1 // pred_check
      _
    $region63: #{tpu_custom_call.1} parent=1 // pred_check_branch
      %138 = sbr.rel (0) target = $region65
    $region64: #{tpu_custom_call.1} parent=1 // pred_region
      %s140 = ssub.s32 16, 16
      %141 = vsyncadd [#allocation18], %s140
      %s143 = sshll.u32 [#allocation17], 4
      %s144 = int_to_ptr.vmem [resolvable:$true] %s143
      %146 = dma.hbm_to_vmem [thread:$0]  %s15, 16, %s144, [#allocation18]
    $region65: #{tpu_custom_call.1} parent=1 // pred_fallthru
      _
    // Predicated region
    $region66: #{tpu_custom_call.1} parent=1 // pred_check
      _
    $region67: #{tpu_custom_call.1} parent=1 // pred_check_branch
      %148 = sbr.rel (0) target = $region69
    $region68: #{tpu_custom_call.1} parent=1 // pred_region
      _
    $region69: #{tpu_custom_call.1} parent=1 // pred_fallthru
      _
    // Predicated region
    $region70: #{tpu_custom_call.1} parent=1 // pred_check
      _
    $region71: #{tpu_custom_call.1} parent=1 // pred_check_branch
      %150 = sbr.rel (0) target = $region73
    $region72: #{tpu_custom_call.1} parent=1 // pred_region
      _
    $region73: #{tpu_custom_call.1} parent=1 // pred_fallthru
      _
    // Predicated region
    $region74: #{tpu_custom_call.1} parent=1 // pred_check
      _
    $region75: #{tpu_custom_call.1} parent=1 // pred_check_branch
      %152 = sbr.rel (0) target = $region77
    $region76: #{tpu_custom_call.1} parent=1 // pred_region
      _
    $region77: #{tpu_custom_call.1} parent=1 // pred_fallthru
      _
    // Predicated region
    $region78: #{tpu_custom_call.1} parent=1 // pred_check
      _
    $region79: #{tpu_custom_call.1} parent=1 // pred_check_branch
      %154 = sbr.rel (0) target = $region81
    $region80: #{tpu_custom_call.1} parent=1 // pred_region
      _
    $region81: #{tpu_custom_call.1} parent=1 // pred_fallthru
      _
    // Predicated region
    $region82: #{tpu_custom_call.1} parent=1 // pred_check
      _
    $region83: #{tpu_custom_call.1} parent=1 // pred_check_branch
      %156 = sbr.rel (0) target = $region85
    $region84: #{tpu_custom_call.1} parent=1 // pred_region
      _
    $region85: #{tpu_custom_call.1} parent=1 // pred_fallthru
      _
    // Predicated region
    $region86: #{tpu_custom_call.1} parent=1 // pred_check
      _
    $region87: #{tpu_custom_call.1} parent=1 // pred_check_branch
      %158 = sbr.rel (0) target = $region89
    $region88: #{tpu_custom_call.1} parent=1 // pred_region
      %159 = dma.done [#allocation3], 256
    $region89: #{tpu_custom_call.1} parent=1 // pred_fallthru
      _
    // Predicated region
    $region90: #{tpu_custom_call.1} parent=1 // pred_check
      _
    $region91: #{tpu_custom_call.1} parent=1 // pred_check_branch
      %161 = sbr.rel (0) target = $region93
    $region92: #{tpu_custom_call.1} parent=1 // pred_region
      %162 = dma.done [#allocation6], 16
    $region93: #{tpu_custom_call.1} parent=1 // pred_fallthru
      _
    // Predicated region
    $region94: #{tpu_custom_call.1} parent=1 // pred_check
      _
    $region95: #{tpu_custom_call.1} parent=1 // pred_check_branch
      %164 = sbr.rel (0) target = $region97
    $region96: #{tpu_custom_call.1} parent=1 // pred_region
      %165 = dma.done [#allocation6], 64
    $region97: #{tpu_custom_call.1} parent=1 // pred_fallthru
      _
    // Predicated region
    $region98: #{tpu_custom_call.1} parent=1 // pred_check
      _
    $region99: #{tpu_custom_call.1} parent=1 // pred_check_branch
      %167 = sbr.rel (0) target = $region101
    $region100: #{tpu_custom_call.1} parent=1 // pred_region
      %168 = dma.done [#allocation9], 16
    $region101: #{tpu_custom_call.1} parent=1 // pred_fallthru
      _
    // Predicated region
    $region102: #{tpu_custom_call.1} parent=1 // pred_check
      _
    $region103: #{tpu_custom_call.1} parent=1 // pred_check_branch
      %170 = sbr.rel (0) target = $region105
    $region104: #{tpu_custom_call.1} parent=1 // pred_region
      %171 = dma.done [#allocation9], 16
    $region105: #{tpu_custom_call.1} parent=1 // pred_fallthru
      _
    // Predicated region
    $region106: #{tpu_custom_call.1} parent=1 // pred_check
      _
    $region107: #{tpu_custom_call.1} parent=1 // pred_check_branch
      %173 = sbr.rel (0) target = $region109
    $region108: #{tpu_custom_call.1} parent=1 // pred_region
      %174 = dma.done [#allocation12], 16
    $region109: #{tpu_custom_call.1} parent=1 // pred_fallthru
      _
    // Predicated region
    $region110: #{tpu_custom_call.1} parent=1 // pred_check
      _
    $region111: #{tpu_custom_call.1} parent=1 // pred_check_branch
      %176 = sbr.rel (0) target = $region113
    $region112: #{tpu_custom_call.1} parent=1 // pred_region
      %177 = dma.done [#allocation12], 16
    $region113: #{tpu_custom_call.1} parent=1 // pred_fallthru
      _
    // Predicated region
    $region114: #{tpu_custom_call.1} parent=1 // pred_check
      _
    $region115: #{tpu_custom_call.1} parent=1 // pred_check_branch
      %179 = sbr.rel (0) target = $region117
    $region116: #{tpu_custom_call.1} parent=1 // pred_region
      %180 = dma.done [#allocation15], 16
    $region117: #{tpu_custom_call.1} parent=1 // pred_fallthru
      _
    // Predicated region
    $region118: #{tpu_custom_call.1} parent=1 // pred_check
      _
    $region119: #{tpu_custom_call.1} parent=1 // pred_check_branch
      %182 = sbr.rel (0) target = $region121
    $region120: #{tpu_custom_call.1} parent=1 // pred_region
      %183 = dma.done [#allocation15], 16
    $region121: #{tpu_custom_call.1} parent=1 // pred_fallthru
      _
    // Predicated region
    $region122: #{tpu_custom_call.1} parent=1 // pred_check
      _
    $region123: #{tpu_custom_call.1} parent=1 // pred_check_branch
      %185 = sbr.rel (0) target = $region125
    $region124: #{tpu_custom_call.1} parent=1 // pred_region
      %186 = dma.done [#allocation18], 16
    $region125: #{tpu_custom_call.1} parent=1 // pred_fallthru
      _
    %v187 = vld [vmem:[#allocation8] sm:$0x1]
    %v188 = vld [vmem:[#allocation10] sm:$0x1]
    %v189 = vld [vmem:[%s3] sm:$0xff]
    %v190 = vld [vmem:[%s3 + $0x8] sm:$0xff]
    %v191 = vld [vmem:[%s3 + $0x10] sm:$0xff]
    %v192 = vld [vmem:[%s3 + $0x18] sm:$0xff]
    %v193 = vld [vmem:[#allocation7] sm:$0xf]
    %v194 = vld [vmem:[#allocation5] sm:$0x1]
    %vm195 = vcmask 253952
    %v196 = vsel %vm195, %v194, 0.0
    %197 = vadd.xlane.f32.xlu0 %v196
    %v198 = vpop.xlane.xlu0 %197
    %v199 = vrcp.pop 32.0
    %v200 = vmul.f32 %v198, %v199
    %v201 = vsub.f32 %v194, %v200
    %v202 = vmul.f32 %v201, %v201
    %v203 = vsel %vm195, %v202, 0.0
    %204 = vadd.xlane.f32.xlu0 %v203
    %v205 = vpop.xlane.xlu0 %204
    %v206 = vmul.f32 %v205, %v199
    %v207 = vadd.f32 %v206, 1e-06
    %v208 = vrsqrt.pop %v207
    %v209 = vmul.f32 %v201, %v208
    %v210 = vmul.f32 %v209, %v187
    %v211 = vadd.f32 %v210, %v188
    %v212 = vld [vmem:[%s7] sm:$0xff]
    %v213 = vld [vmem:[%s7 + $0x8] sm:$0xff]
    %v214 = vld [vmem:[%s7 + $0x10] sm:$0xff]
    %v215 = vld [vmem:[%s7 + $0x18] sm:$0xff]
    %v216 = vld [vmem:[#allocation11] sm:$0x1]
    %vm217 = vcmask 261120
    %v219 = vsel %vm217, %v211, 0
    %221 = vmatprep.subr.mxu0 0.0
    %222 = vmatpush1.msra.mxu0 %v212
    %223 = vmatprep.subr.mxu0 0.0
    %224 = vmatpush1.msra.mxu0 %v213
    %225 = vmatprep.subr.mxu0 0.0
    %226 = vmatpush1.msra.mxu0 %v214
    %227 = vmatprep.subr.mxu0 0.0
    %228 = vmatpush1.msra.mxu0 %v215
    %229 = vmatprep.subr.mxu0 0.0
    %230 = vmatpush1.msra.mxu0 0.0
    %231 = vmatprep.subr.mxu0 0.0
    %232 = vmatpush1.msra.mxu0 0.0
    %233 = vmatprep.subr.mxu0 0.0
    %234 = vmatpush1.msra.mxu0 0.0
    %235 = vmatprep.subr.mxu0 0.0
    %236 = vmatpush1.msra.mxu0 0.0
    %237 = vmatprep.subr.mxu0 0.0
    %238 = vmatpush1.msra.mxu0 0.0
    %239 = vmatprep.subr.mxu0 0.0
    %240 = vmatpush1.msra.mxu0 0.0
    %241 = vmatprep.subr.mxu0 0.0
    %242 = vmatpush1.msra.mxu0 0.0
    %243 = vmatprep.subr.mxu0 0.0
    %244 = vmatpush1.msra.mxu0 0.0
    %245 = vmatprep.subr.mxu0 0.0
    %246 = vmatpush1.msra.mxu0 0.0
    %247 = vmatprep.subr.mxu0 0.0
    %248 = vmatpush1.msra.mxu0 0.0
    %249 = vmatprep.subr.mxu0 0.0
    %250 = vmatpush1.msra.mxu0 0.0
    %251 = vmatprep.subr.mxu0 0.0
    %252 = vmatpush1.msra.mxu0 0.0
    %253 = vmatprep.subr.mxu0 0.0
    %254 = vmatpush1.msra.mxu0 0.0
    %255 = vmatprep.subr.mxu0 0.0
    %256 = vmatpush1.msra.mxu0 0.0
    %257 = vmatprep.subr.mxu0 0.0
    %258 = vmatpush1.msra.mxu0 0.0
    %259 = vmatprep.subr.mxu0 0.0
    %260 = vmatpush1.msra.mxu0 0.0
    %261 = vmatprep.subr.mxu0 0.0
    %262 = vmatpush1.msra.mxu0 0.0
    %263 = vmatprep.subr.mxu0 0.0
    %264 = vmatpush1.msra.mxu0 0.0
    %265 = vmatprep.subr.mxu0 0.0
    %266 = vmatpush1.msra.mxu0 0.0
    %267 = vmatprep.subr.mxu0 0.0
    %268 = vmatpush1.msra.mxu0 0.0
    %269 = vmatprep.subr.mxu0 0.0
    %270 = vmatpush1.msra.mxu0 0.0
    %271 = vmatprep.subr.mxu0 0.0
    %272 = vmatpush1.msra.mxu0 0.0
    %273 = vmatprep.subr.mxu0 0.0
    %274 = vmatpush1.msra.mxu0 0.0
    %275 = vmatprep.subr.mxu0 0.0
    %276 = vmatpush1.msra.mxu0 0.0
    %277 = vmatprep.subr.mxu0 0.0
    %278 = vmatpush1.msra.mxu0 0.0
    %279 = vmatprep.subr.mxu0 0.0
    %280 = vmatpush1.msra.mxu0 0.0
    %281 = vmatprep.subr.mxu0 0.0
    %282 = vmatpush1.msra.mxu0 0.0
    %283 = vmatprep.subr.mxu0 0.0
    %284 = vmatpush1.msra.mxu0 0.0
    %285 = vmatprep.mubr.f32.mxu0 0.0
    %286 = vmatmul.mubr.f32.gmra.mrb[0].mxu0 %v219
    %v287 = vpop.f32.mrb[0].mxu0
    %v288 = vadd.f32 %v216, %v287
    %v289 = vpop.f32.mrb[0].mxu0
    %290 = vdwg.mxu0
    %v291 = vmul.f32 %v288, 0.35355338
    %v292 = vld [vmem:[%s9] sm:$0xff]
    %v293 = vld [vmem:[%s9 + $0x8] sm:$0xff]
    %v294 = vld [vmem:[%s9 + $0x10] sm:$0xff]
    %v295 = vld [vmem:[%s9 + $0x18] sm:$0xff]
    %v296 = vld [vmem:[#allocation13] sm:$0x1]
    %297 = vmatprep.subr.mxu0 0.0
    %298 = vmatpush1.msra.mxu0 %v292
    %299 = vmatprep.subr.mxu0 0.0
    %300 = vmatpush1.msra.mxu0 %v293
    %301 = vmatprep.subr.mxu0 0.0
    %302 = vmatpush1.msra.mxu0 %v294
    %303 = vmatprep.subr.mxu0 0.0
    %304 = vmatpush1.msra.mxu0 %v295
    %305 = vmatprep.subr.mxu0 0.0
    %306 = vmatpush1.msra.mxu0 0.0
    %307 = vmatprep.subr.mxu0 0.0
    %308 = vmatpush1.msra.mxu0 0.0
    %309 = vmatprep.subr.mxu0 0.0
    %310 = vmatpush1.msra.mxu0 0.0
    %311 = vmatprep.subr.mxu0 0.0
    %312 = vmatpush1.msra.mxu0 0.0
    %313 = vmatprep.subr.mxu0 0.0
    %314 = vmatpush1.msra.mxu0 0.0
    %315 = vmatprep.subr.mxu0 0.0
    %316 = vmatpush1.msra.mxu0 0.0
    %317 = vmatprep.subr.mxu0 0.0
    %318 = vmatpush1.msra.mxu0 0.0
    %319 = vmatprep.subr.mxu0 0.0
    %320 = vmatpush1.msra.mxu0 0.0
    %321 = vmatprep.subr.mxu0 0.0
    %322 = vmatpush1.msra.mxu0 0.0
    %323 = vmatprep.subr.mxu0 0.0
    %324 = vmatpush1.msra.mxu0 0.0
    %325 = vmatprep.subr.mxu0 0.0
    %326 = vmatpush1.msra.mxu0 0.0
    %327 = vmatprep.subr.mxu0 0.0
    %328 = vmatpush1.msra.mxu0 0.0
    %329 = vmatprep.subr.mxu0 0.0
    %330 = vmatpush1.msra.mxu0 0.0
    %331 = vmatprep.subr.mxu0 0.0
    %332 = vmatpush1.msra.mxu0 0.0
    %333 = vmatprep.subr.mxu0 0.0
    %334 = vmatpush1.msra.mxu0 0.0
    %335 = vmatprep.subr.mxu0 0.0
    %336 = vmatpush1.msra.mxu0 0.0
    %337 = vmatprep.subr.mxu0 0.0
    %338 = vmatpush1.msra.mxu0 0.0
    %339 = vmatprep.subr.mxu0 0.0
    %340 = vmatpush1.msra.mxu0 0.0
    %341 = vmatprep.subr.mxu0 0.0
    %342 = vmatpush1.msra.mxu0 0.0
    %343 = vmatprep.subr.mxu0 0.0
    %344 = vmatpush1.msra.mxu0 0.0
    %345 = vmatprep.subr.mxu0 0.0
    %346 = vmatpush1.msra.mxu0 0.0
    %347 = vmatprep.subr.mxu0 0.0
    %348 = vmatpush1.msra.mxu0 0.0
    %349 = vmatprep.subr.mxu0 0.0
    %350 = vmatpush1.msra.mxu0 0.0
    %351 = vmatprep.subr.mxu0 0.0
    %352 = vmatpush1.msra.mxu0 0.0
    %353 = vmatprep.subr.mxu0 0.0
    %354 = vmatpush1.msra.mxu0 0.0
    %355 = vmatprep.subr.mxu0 0.0
    %356 = vmatpush1.msra.mxu0 0.0
    %357 = vmatprep.subr.mxu0 0.0
    %358 = vmatpush1.msra.mxu0 0.0
    %359 = vmatprep.subr.mxu0 0.0
    %360 = vmatpush1.msra.mxu0 0.0
    %361 = vmatprep.mubr.f32.mxu0 0.0
    %362 = vmatmul.mubr.f32.gmra.mrb[0].mxu0 %v219
    %v363 = vpop.f32.mrb[0].mxu0
    %v364 = vadd.f32 %v296, %v363
    %v365 = vpop.f32.mrb[0].mxu0
    %366 = vdwg.mxu0
    %v367 = vld [vmem:[%s11] sm:$0xff]
    %v368 = vld [vmem:[%s11 + $0x8] sm:$0xff]
    %v369 = vld [vmem:[%s11 + $0x10] sm:$0xff]
    %v370 = vld [vmem:[%s11 + $0x18] sm:$0xff]
    %v371 = vld [vmem:[#allocation14] sm:$0x1]
    %372 = vmatprep.subr.mxu0 0.0
    %373 = vmatpush1.msra.mxu0 %v367
    %374 = vmatprep.subr.mxu0 0.0
    %375 = vmatpush1.msra.mxu0 %v368
    %376 = vmatprep.subr.mxu0 0.0
    %377 = vmatpush1.msra.mxu0 %v369
    %378 = vmatprep.subr.mxu0 0.0
    %379 = vmatpush1.msra.mxu0 %v370
    %380 = vmatprep.subr.mxu0 0.0
    %381 = vmatpush1.msra.mxu0 0.0
    %382 = vmatprep.subr.mxu0 0.0
    %383 = vmatpush1.msra.mxu0 0.0
    %384 = vmatprep.subr.mxu0 0.0
    %385 = vmatpush1.msra.mxu0 0.0
    %386 = vmatprep.subr.mxu0 0.0
    %387 = vmatpush1.msra.mxu0 0.0
    %388 = vmatprep.subr.mxu0 0.0
    %389 = vmatpush1.msra.mxu0 0.0
    %390 = vmatprep.subr.mxu0 0.0
    %391 = vmatpush1.msra.mxu0 0.0
    %392 = vmatprep.subr.mxu0 0.0
    %393 = vmatpush1.msra.mxu0 0.0
    %394 = vmatprep.subr.mxu0 0.0
    %395 = vmatpush1.msra.mxu0 0.0
    %396 = vmatprep.subr.mxu0 0.0
    %397 = vmatpush1.msra.mxu0 0.0
    %398 = vmatprep.subr.mxu0 0.0
    %399 = vmatpush1.msra.mxu0 0.0
    %400 = vmatprep.subr.mxu0 0.0
    %401 = vmatpush1.msra.mxu0 0.0
    %402 = vmatprep.subr.mxu0 0.0
    %403 = vmatpush1.msra.mxu0 0.0
    %404 = vmatprep.subr.mxu0 0.0
    %405 = vmatpush1.msra.mxu0 0.0
    %406 = vmatprep.subr.mxu0 0.0
    %407 = vmatpush1.msra.mxu0 0.0
    %408 = vmatprep.subr.mxu0 0.0
    %409 = vmatpush1.msra.mxu0 0.0
    %410 = vmatprep.subr.mxu0 0.0
    %411 = vmatpush1.msra.mxu0 0.0
    %412 = vmatprep.subr.mxu0 0.0
    %413 = vmatpush1.msra.mxu0 0.0
    %414 = vmatprep.subr.mxu0 0.0
    %415 = vmatpush1.msra.mxu0 0.0
    %416 = vmatprep.subr.mxu0 0.0
    %417 = vmatpush1.msra.mxu0 0.0
    %418 = vmatprep.subr.mxu0 0.0
    %419 = vmatpush1.msra.mxu0 0.0
    %420 = vmatprep.subr.mxu0 0.0
    %421 = vmatpush1.msra.mxu0 0.0
    %422 = vmatprep.subr.mxu0 0.0
    %423 = vmatpush1.msra.mxu0 0.0
    %424 = vmatprep.subr.mxu0 0.0
    %425 = vmatpush1.msra.mxu0 0.0
    %426 = vmatprep.subr.mxu0 0.0
    %427 = vmatpush1.msra.mxu0 0.0
    %428 = vmatprep.subr.mxu0 0.0
    %429 = vmatpush1.msra.mxu0 0.0
    %430 = vmatprep.subr.mxu0 0.0
    %431 = vmatpush1.msra.mxu0 0.0
    %432 = vmatprep.subr.mxu0 0.0
    %433 = vmatpush1.msra.mxu0 0.0
    %434 = vmatprep.subr.mxu0 0.0
    %435 = vmatpush1.msra.mxu0 0.0
    %436 = vmatprep.mubr.f32.mxu0 0.0
    %437 = vmatmul.mubr.f32.gmra.mrb[0].mxu0 %v219
    %v438 = vpop.f32.mrb[0].mxu0
    %v439 = vadd.f32 %v371, %v438
    %v440 = vpop.f32.mrb[0].mxu0
    %441 = vdwg.mxu0
    %v442 = vmul.f32 %v364, %v291
    %v444 = vsel %vm217, %v442, 0
    %446 = vmatprep.subr.mxu0 0.0
    %447 = vmatpush1.msra.mxu0 %v189
    %448 = vmatprep.subr.mxu0 0.0
    %449 = vmatpush1.msra.mxu0 %v190
    %450 = vmatprep.subr.mxu0 0.0
    %451 = vmatpush1.msra.mxu0 %v191
    %452 = vmatprep.subr.mxu0 0.0
    %453 = vmatpush1.msra.mxu0 %v192
    %454 = vmatprep.subr.mxu0 0.0
    %455 = vmatpush1.msra.mxu0 0.0
    %456 = vmatprep.subr.mxu0 0.0
    %457 = vmatpush1.msra.mxu0 0.0
    %458 = vmatprep.subr.mxu0 0.0
    %459 = vmatpush1.msra.mxu0 0.0
    %460 = vmatprep.subr.mxu0 0.0
    %461 = vmatpush1.msra.mxu0 0.0
    %462 = vmatprep.subr.mxu0 0.0
    %463 = vmatpush1.msra.mxu0 0.0
    %464 = vmatprep.subr.mxu0 0.0
    %465 = vmatpush1.msra.mxu0 0.0
    %466 = vmatprep.subr.mxu0 0.0
    %467 = vmatpush1.msra.mxu0 0.0
    %468 = vmatprep.subr.mxu0 0.0
    %469 = vmatpush1.msra.mxu0 0.0
    %470 = vmatprep.subr.mxu0 0.0
    %471 = vmatpush1.msra.mxu0 0.0
    %472 = vmatprep.subr.mxu0 0.0
    %473 = vmatpush1.msra.mxu0 0.0
    %474 = vmatprep.subr.mxu0 0.0
    %475 = vmatpush1.msra.mxu0 0.0
    %476 = vmatprep.subr.mxu0 0.0
    %477 = vmatpush1.msra.mxu0 0.0
    %478 = vmatprep.subr.mxu0 0.0
    %479 = vmatpush1.msra.mxu0 0.0
    %480 = vmatprep.subr.mxu0 0.0
    %481 = vmatpush1.msra.mxu0 0.0
    %482 = vmatprep.subr.mxu0 0.0
    %483 = vmatpush1.msra.mxu0 0.0
    %484 = vmatprep.subr.mxu0 0.0
    %485 = vmatpush1.msra.mxu0 0.0
    %486 = vmatprep.subr.mxu0 0.0
    %487 = vmatpush1.msra.mxu0 0.0
    %488 = vmatprep.subr.mxu0 0.0
    %489 = vmatpush1.msra.mxu0 0.0
    %490 = vmatprep.subr.mxu0 0.0
    %491 = vmatpush1.msra.mxu0 0.0
    %492 = vmatprep.subr.mxu0 0.0
    %493 = vmatpush1.msra.mxu0 0.0
    %494 = vmatprep.subr.mxu0 0.0
    %495 = vmatpush1.msra.mxu0 0.0
    %496 = vmatprep.subr.mxu0 0.0
    %497 = vmatpush1.msra.mxu0 0.0
    %498 = vmatprep.subr.mxu0 0.0
    %499 = vmatpush1.msra.mxu0 0.0
    %500 = vmatprep.subr.mxu0 0.0
    %501 = vmatpush1.msra.mxu0 0.0
    %502 = vmatprep.subr.mxu0 0.0
    %503 = vmatpush1.msra.mxu0 0.0
    %504 = vmatprep.subr.mxu0 0.0
    %505 = vmatpush1.msra.mxu0 0.0
    %506 = vmatprep.subr.mxu0 0.0
    %507 = vmatpush1.msra.mxu0 0.0
    %508 = vmatprep.subr.mxu0 0.0
    %509 = vmatpush1.msra.mxu0 0.0
    %510 = vmatprep.mubr.f32.mxu0 0.0
    %511 = vmatmul.mubr.f32.gmra.mrb[0].mxu0 %v444
    %v512 = vpop.f32.mrb[0].mxu0
    %v513 = vadd.f32 0.0, %v512
    %v514 = vpop.f32.mrb[0].mxu0
    %515 = vdwg.mxu0
    %v516 = vld [vmem:[#allocation2] sm:$0xff]
    %v517 = vld [vmem:[#allocation2 + $0x8] sm:$0xff]
    %v518 = vsel %vm217, %v516, 0.0
    %519 = vadd.xlane.f32.xlu0 %v518
    %v520 = vpop.xlane.xlu0 %519
    %v521 = vsel %vm217, %v517, 0.0
    %522 = vadd.xlane.f32.xlu0 %v521
    %v523 = vpop.xlane.xlu0 %522
    %v524 = vmul.f32 %v520, %v199
    %v525 = vmul.f32 %v523, %v199
    %v526 = vsub.f32 %v516, %v524
    %v527 = vsub.f32 %v517, %v525
    %v528 = vmul.f32 %v526, %v526
    %v529 = vmul.f32 %v527, %v527
    %v530 = vsel %vm217, %v528, 0.0
    %531 = vadd.xlane.f32.xlu0 %v530
    %v532 = vpop.xlane.xlu0 %531
    %v533 = vsel %vm217, %v529, 0.0
    %534 = vadd.xlane.f32.xlu0 %v533
    %v535 = vpop.xlane.xlu0 %534
    %v536 = vmul.f32 %v532, %v199
    %v537 = vmul.f32 %v535, %v199
    %v538 = vadd.f32 %v536, 1e-06
    %v539 = vadd.f32 %v537, 1e-06
    %v540 = vrsqrt.pop %v538
    %v541 = vrsqrt.pop %v539
    %v542 = vmul.f32 %v526, %v540
    %v543 = vmul.f32 %v527, %v541
    %v545 = vlaneseq
    %v546 = vshrl.u32 %v545, 7
    %v547 = vsub.s32 0, %v546
    %v548 = vrot.slane %v187, %v547
    %v550 = vmul.f32 %v542, %v548
    %v551 = vmul.f32 %v543, %v548
    %v553 = vlaneseq
    %v554 = vshrl.u32 %v553, 7
    %v555 = vsub.s32 0, %v554
    %v556 = vrot.slane %v188, %v555
    %v558 = vadd.f32 %v550, %v556
    %v559 = vadd.f32 %v551, %v556
    %v561 = vlaneseq
    %v562 = vshrl.u32 %v561, 7
    %v563 = vsub.s32 0, %v562
    %v564 = vrot.slane %v296, %v563
    %v567 = vsel %vm217, %v558, 0
    %v570 = vsel %vm217, %v559, 0
    %572 = vmatprep.subr.mxu0 0.0
    %573 = vmatpush1.msra.mxu0 %v292
    %574 = vmatprep.subr.mxu0 0.0
    %575 = vmatpush1.msra.mxu0 %v293
    %576 = vmatprep.subr.mxu0 0.0
    %577 = vmatpush1.msra.mxu0 %v294
    %578 = vmatprep.subr.mxu0 0.0
    %579 = vmatpush1.msra.mxu0 %v295
    %580 = vmatprep.subr.mxu0 0.0
    %581 = vmatpush1.msra.mxu0 0.0
    %582 = vmatprep.subr.mxu0 0.0
    %583 = vmatpush1.msra.mxu0 0.0
    %584 = vmatprep.subr.mxu0 0.0
    %585 = vmatpush1.msra.mxu0 0.0
    %586 = vmatprep.subr.mxu0 0.0
    %587 = vmatpush1.msra.mxu0 0.0
    %588 = vmatprep.subr.mxu0 0.0
    %589 = vmatpush1.msra.mxu0 0.0
    %590 = vmatprep.subr.mxu0 0.0
    %591 = vmatpush1.msra.mxu0 0.0
    %592 = vmatprep.subr.mxu0 0.0
    %593 = vmatpush1.msra.mxu0 0.0
    %594 = vmatprep.subr.mxu0 0.0
    %595 = vmatpush1.msra.mxu0 0.0
    %596 = vmatprep.subr.mxu0 0.0
    %597 = vmatpush1.msra.mxu0 0.0
    %598 = vmatprep.subr.mxu0 0.0
    %599 = vmatpush1.msra.mxu0 0.0
    %600 = vmatprep.subr.mxu0 0.0
    %601 = vmatpush1.msra.mxu0 0.0
    %602 = vmatprep.subr.mxu0 0.0
    %603 = vmatpush1.msra.mxu0 0.0
    %604 = vmatprep.subr.mxu0 0.0
    %605 = vmatpush1.msra.mxu0 0.0
    %606 = vmatprep.subr.mxu0 0.0
    %607 = vmatpush1.msra.mxu0 0.0
    %608 = vmatprep.subr.mxu0 0.0
    %609 = vmatpush1.msra.mxu0 0.0
    %610 = vmatprep.subr.mxu0 0.0
    %611 = vmatpush1.msra.mxu0 0.0
    %612 = vmatprep.subr.mxu0 0.0
    %613 = vmatpush1.msra.mxu0 0.0
    %614 = vmatprep.subr.mxu0 0.0
    %615 = vmatpush1.msra.mxu0 0.0
    %616 = vmatprep.subr.mxu0 0.0
    %617 = vmatpush1.msra.mxu0 0.0
    %618 = vmatprep.subr.mxu0 0.0
    %619 = vmatpush1.msra.mxu0 0.0
    %620 = vmatprep.subr.mxu0 0.0
    %621 = vmatpush1.msra.mxu0 0.0
    %622 = vmatprep.subr.mxu0 0.0
    %623 = vmatpush1.msra.mxu0 0.0
    %624 = vmatprep.subr.mxu0 0.0
    %625 = vmatpush1.msra.mxu0 0.0
    %626 = vmatprep.subr.mxu0 0.0
    %627 = vmatpush1.msra.mxu0 0.0
    %628 = vmatprep.subr.mxu0 0.0
    %629 = vmatpush1.msra.mxu0 0.0
    %630 = vmatprep.subr.mxu0 0.0
    %631 = vmatpush1.msra.mxu0 0.0
    %632 = vmatprep.subr.mxu0 0.0
    %633 = vmatpush1.msra.mxu0 0.0
    %634 = vmatprep.subr.mxu0 0.0
    %635 = vmatpush1.msra.mxu0 0.0
    %636 = vmatprep.mubr.f32.mxu0 0.0
    %637 = vmatmul.mubr.f32.gmra.mrb[0].mxu0 %v567
    %v638 = vpop.f32.mrb[0].mxu0
    %v639 = vadd.f32 %v564, %v638
    %v640 = vpop.f32.mrb[0].mxu0
    %641 = vmatprep.mubr.f32.mxu0 0.0
    %642 = vmatmul.mubr.f32.gmra.mrb[0].mxu0 %v570
    %v643 = vpop.f32.mrb[0].mxu0
    %v644 = vadd.f32 %v564, %v643
    %v645 = vpop.f32.mrb[0].mxu0
    %646 = vdwg.mxu0
    %v648 = vlaneseq
    %v649 = vshrl.u32 %v648, 7
    %v650 = vsub.s32 0, %v649
    %v651 = vrot.slane %v371, %v650
    %653 = vmatprep.subr.mxu0 0.0
    %654 = vmatpush1.msra.mxu0 %v367
    %655 = vmatprep.subr.mxu0 0.0
    %656 = vmatpush1.msra.mxu0 %v368
    %657 = vmatprep.subr.mxu0 0.0
    %658 = vmatpush1.msra.mxu0 %v369
    %659 = vmatprep.subr.mxu0 0.0
    %660 = vmatpush1.msra.mxu0 %v370
    %661 = vmatprep.subr.mxu0 0.0
    %662 = vmatpush1.msra.mxu0 0.0
    %663 = vmatprep.subr.mxu0 0.0
    %664 = vmatpush1.msra.mxu0 0.0
    %665 = vmatprep.subr.mxu0 0.0
    %666 = vmatpush1.msra.mxu0 0.0
    %667 = vmatprep.subr.mxu0 0.0
    %668 = vmatpush1.msra.mxu0 0.0
    %669 = vmatprep.subr.mxu0 0.0
    %670 = vmatpush1.msra.mxu0 0.0
    %671 = vmatprep.subr.mxu0 0.0
    %672 = vmatpush1.msra.mxu0 0.0
    %673 = vmatprep.subr.mxu0 0.0
    %674 = vmatpush1.msra.mxu0 0.0
    %675 = vmatprep.subr.mxu0 0.0
    %676 = vmatpush1.msra.mxu0 0.0
    %677 = vmatprep.subr.mxu0 0.0
    %678 = vmatpush1.msra.mxu0 0.0
    %679 = vmatprep.subr.mxu0 0.0
    %680 = vmatpush1.msra.mxu0 0.0
    %681 = vmatprep.subr.mxu0 0.0
    %682 = vmatpush1.msra.mxu0 0.0
    %683 = vmatprep.subr.mxu0 0.0
    %684 = vmatpush1.msra.mxu0 0.0
    %685 = vmatprep.subr.mxu0 0.0
    %686 = vmatpush1.msra.mxu0 0.0
    %687 = vmatprep.subr.mxu0 0.0
    %688 = vmatpush1.msra.mxu0 0.0
    %689 = vmatprep.subr.mxu0 0.0
    %690 = vmatpush1.msra.mxu0 0.0
    %691 = vmatprep.subr.mxu0 0.0
    %692 = vmatpush1.msra.mxu0 0.0
    %693 = vmatprep.subr.mxu0 0.0
    %694 = vmatpush1.msra.mxu0 0.0
    %695 = vmatprep.subr.mxu0 0.0
    %696 = vmatpush1.msra.mxu0 0.0
    %697 = vmatprep.subr.mxu0 0.0
    %698 = vmatpush1.msra.mxu0 0.0
    %699 = vmatprep.subr.mxu0 0.0
    %700 = vmatpush1.msra.mxu0 0.0
    %701 = vmatprep.subr.mxu0 0.0
    %702 = vmatpush1.msra.mxu0 0.0
    %703 = vmatprep.subr.mxu0 0.0
    %704 = vmatpush1.msra.mxu0 0.0
    %705 = vmatprep.subr.mxu0 0.0
    %706 = vmatpush1.msra.mxu0 0.0
    %707 = vmatprep.subr.mxu0 0.0
    %708 = vmatpush1.msra.mxu0 0.0
    %709 = vmatprep.subr.mxu0 0.0
    %710 = vmatpush1.msra.mxu0 0.0
    %711 = vmatprep.subr.mxu0 0.0
    %712 = vmatpush1.msra.mxu0 0.0
    %713 = vmatprep.subr.mxu0 0.0
    %714 = vmatpush1.msra.mxu0 0.0
    %715 = vmatprep.subr.mxu0 0.0
    %716 = vmatpush1.msra.mxu0 0.0
    %717 = vmatprep.mubr.f32.mxu0 0.0
    %718 = vmatmul.mubr.f32.gmra.mrb[0].mxu0 %v567
    %v719 = vpop.f32.mrb[0].mxu0
    %v720 = vadd.f32 %v651, %v719
    %v721 = vpop.f32.mrb[0].mxu0
    %722 = vmatprep.mubr.f32.mxu0 0.0
    %723 = vmatmul.mubr.f32.gmra.mrb[0].mxu0 %v570
    %v724 = vpop.f32.mrb[0].mxu0
    %v725 = vadd.f32 %v651, %v724
    %v726 = vpop.f32.mrb[0].mxu0
    %727 = vdwg.mxu0
    %v728 = vlaneseq
    %v729 = vshrl.u32 %v728, 7
    %v730 = vsub.s32 0, %v729
    %v731 = vrot.slane %v291, %v730
    %v732 = vmul.f32 %v639, %v731
    %v733 = vmul.f32 %v644, %v731
    %v735 = vsel %vm217, %v732, 0
    %v738 = vsel %vm217, %v733, 0
    %740 = vmatprep.subr.mxu0 0.0
    %741 = vmatpush1.msra.mxu0 %v189
    %742 = vmatprep.subr.mxu0 0.0
    %743 = vmatpush1.msra.mxu0 %v190
    %744 = vmatprep.subr.mxu0 0.0
    %745 = vmatpush1.msra.mxu0 %v191
    %746 = vmatprep.subr.mxu0 0.0
    %747 = vmatpush1.msra.mxu0 %v192
    %748 = vmatprep.subr.mxu0 0.0
    %749 = vmatpush1.msra.mxu0 0.0
    %750 = vmatprep.subr.mxu0 0.0
    %751 = vmatpush1.msra.mxu0 0.0
    %752 = vmatprep.subr.mxu0 0.0
    %753 = vmatpush1.msra.mxu0 0.0
    %754 = vmatprep.subr.mxu0 0.0
    %755 = vmatpush1.msra.mxu0 0.0
    %756 = vmatprep.subr.mxu0 0.0
    %757 = vmatpush1.msra.mxu0 0.0
    %758 = vmatprep.subr.mxu0 0.0
    %759 = vmatpush1.msra.mxu0 0.0
    %760 = vmatprep.subr.mxu0 0.0
    %761 = vmatpush1.msra.mxu0 0.0
    %762 = vmatprep.subr.mxu0 0.0
    %763 = vmatpush1.msra.mxu0 0.0
    %764 = vmatprep.subr.mxu0 0.0
    %765 = vmatpush1.msra.mxu0 0.0
    %766 = vmatprep.subr.mxu0 0.0
    %767 = vmatpush1.msra.mxu0 0.0
    %768 = vmatprep.subr.mxu0 0.0
    %769 = vmatpush1.msra.mxu0 0.0
    %770 = vmatprep.subr.mxu0 0.0
    %771 = vmatpush1.msra.mxu0 0.0
    %772 = vmatprep.subr.mxu0 0.0
    %773 = vmatpush1.msra.mxu0 0.0
    %774 = vmatprep.subr.mxu0 0.0
    %775 = vmatpush1.msra.mxu0 0.0
    %776 = vmatprep.subr.mxu0 0.0
    %777 = vmatpush1.msra.mxu0 0.0
    %778 = vmatprep.subr.mxu0 0.0
    %779 = vmatpush1.msra.mxu0 0.0
    %780 = vmatprep.subr.mxu0 0.0
    %781 = vmatpush1.msra.mxu0 0.0
    %782 = vmatprep.subr.mxu0 0.0
    %783 = vmatpush1.msra.mxu0 0.0
    %784 = vmatprep.subr.mxu0 0.0
    %785 = vmatpush1.msra.mxu0 0.0
    %786 = vmatprep.subr.mxu0 0.0
    %787 = vmatpush1.msra.mxu0 0.0
    %788 = vmatprep.subr.mxu0 0.0
    %789 = vmatpush1.msra.mxu0 0.0
    %790 = vmatprep.subr.mxu0 0.0
    %791 = vmatpush1.msra.mxu0 0.0
    %792 = vmatprep.subr.mxu0 0.0
    %793 = vmatpush1.msra.mxu0 0.0
    %794 = vmatprep.subr.mxu0 0.0
    %795 = vmatpush1.msra.mxu0 0.0
    %796 = vmatprep.subr.mxu0 0.0
    %797 = vmatpush1.msra.mxu0 0.0
    %798 = vmatprep.subr.mxu0 0.0
    %799 = vmatpush1.msra.mxu0 0.0
    %800 = vmatprep.subr.mxu0 0.0
    %801 = vmatpush1.msra.mxu0 0.0
    %802 = vmatprep.subr.mxu0 0.0
    %803 = vmatpush1.msra.mxu0 0.0
    %804 = vmatprep.mubr.f32.mxu0 0.0
    %805 = vmatmul.mubr.f32.gmra.mrb[0].mxu0 %v735
    %v806 = vpop.f32.mrb[0].mxu0
    %v807 = vadd.f32 0.0, %v806
    %v808 = vpop.f32.mrb[0].mxu0
    %809 = vmatprep.mubr.f32.mxu0 0.0
    %810 = vmatmul.mubr.f32.gmra.mrb[0].mxu0 %v738
    %v811 = vpop.f32.mrb[0].mxu0
    %v812 = vadd.f32 0.0, %v811
    %v813 = vpop.f32.mrb[0].mxu0
    %814 = vdwg.mxu0
    %v815 = vlaneseq
    %v816 = vshrl.u32 %v815, 7
    %v817 = vld [vmem:[%s0] sm:$0x3]
    %v819 = vunpack.c.l.s4 1966171168
    %v820 = vunpack.c.0.s8 %v819
    %v821 = vlaneseq
    %v822 = vshrl.u32 %v821, 7
    %v823 = vsub.s32 %v820, %v822
    %v824 = vrot.slane %v817, %v823
    %v825 = vcombine.high %v824, %v824
    %v827 = vunpack.c.l.s4 1966171168
    %v828 = vunpack.c.0.s8 %v827
    %v829 = vlaneseq
    %v830 = vshrl.u32 %v829, 7
    %v831 = vsub.s32 %v828, %v830
    %v832 = vrot.slane %v824, %v831
    %v834 = vunpack.c.l.s4 1966171168
    %v835 = vunpack.c.0.s8 %v834
    %v836 = vlaneseq
    %v837 = vshrl.u32 %v836, 7
    %v838 = vsub.s32 %v835, %v837
    %v839 = vrot.slane %v825, %v838
    %v840 = vlaneseq
    %v841 = vshrl.u32 %v840, 7
    %v842 = vsub.s32 0, %v841
    %v843 = vrot.slane %v832, %v842
    %v844 = vlaneseq
    %v845 = vshrl.u32 %v844, 7
    %v846 = vsub.s32 0, %v845
    %v847 = vrot.slane %v839, %v846
    %vm848 = vcmp.lt.s32.totalorder %v816, %v843
    %vm849 = vcmp.lt.s32.totalorder %v816, %v847
    %v850 = vsel %vm848, 1, 0
    %v851 = vsel %vm849, 1, 0
    %852 = vset.pattern.permute.xlu0 0
    %853 = vperm.xlu0 %852, %v850
    %v854 = vpop.permute.xlu0 %853
    %855 = vset.pattern.permute.xlu0 0
    %856 = vperm.xlu0 %855, %v851
    %v857 = vpop.permute.xlu0 %856
    %vm858 = vcmp.eq.s32.totalorder %v854, 1
    %vm859 = vcmp.eq.s32.totalorder %v857, 1
    %v860 = vsel %vm858, %v807, -1e+18
    %v861 = vsel %vm859, %v812, -1e+18
    %vm862 = vcmask 31744
    %v863 = vsel %vm862, %v860, -inf
    %v864 = vrot.slane %v863, 4
    %v865 = vmax.f32 %v863, %v864
    %v866 = vrot.slane %v865, 2
    %v867 = vmax.f32 %v865, %v866
    %v868 = vrot.slane %v867, 1
    %v869 = vmax.f32 %v867, %v868
    %v870 = vsel %vm862, %v861, -inf
    %v871 = vrot.slane %v870, 4
    %v872 = vmax.f32 %v870, %v871
    %v873 = vrot.slane %v872, 2
    %v874 = vmax.f32 %v872, %v873
    %v875 = vrot.slane %v874, 1
    %v876 = vmax.f32 %v874, %v875
    %v877 = vlaneseq
    %v878 = vshrl.u32 %v877, 7
    %v879 = vsub.s32 0, %v878
    %v880 = vrot.slane %v513, %v879
    %v881 = vmax.f32 %v869, %v880
    %v882 = vmax.f32 %v876, %v880
    %v883 = vlaneseq
    %v884 = vshrl.u32 %v883, 7
    %v885 = vsub.s32 0, %v884
    %v886 = vrot.slane %v881, %v885
    %v887 = vlaneseq
    %v888 = vshrl.u32 %v887, 7
    %v889 = vsub.s32 0, %v888
    %v890 = vrot.slane %v882, %v889
    %v891 = vsub.f32 %v860, %v886
    %v892 = vsub.f32 %v861, %v890
    %v893 = vmul.f32 %v891, 1.442695
    %v894 = vpow.pop %v893
    %v895 = vmul.f32 %v892, 1.442695
    %v896 = vpow.pop %v895
    %v899 = vrot.slane %v882, 7
    %vm900 = vcmask 1041409
    %v901 = vsel %vm900, %v899, %v881
    %v903 = vsub.f32 %v880, %v901
    %v904 = vmul.f32 %v903, 1.442695
    %v905 = vpow.pop %v904
    %v906 = vsel %vm862, %v894, 0.0
    %v907 = vrot.slane %v906, 4
    %v908 = vadd.f32 %v906, %v907
    %v909 = vrot.slane %v908, 2
    %v910 = vadd.f32 %v908, %v909
    %v911 = vrot.slane %v910, 1
    %v912 = vadd.f32 %v910, %v911
    %v913 = vsel %vm862, %v896, 0.0
    %v914 = vrot.slane %v913, 4
    %v915 = vadd.f32 %v913, %v914
    %v916 = vrot.slane %v915, 2
    %v917 = vadd.f32 %v915, %v916
    %v918 = vrot.slane %v917, 1
    %v919 = vadd.f32 %v917, %v918
    %v922 = vsel %vm900, %v919, %v912
    %v924 = vadd.f32 %v905, %v922
    %v926 = vsel %vm862, %v894, 0
    %v929 = vsel %vm862, %v896, 0
    %vm931 = vcmask 1043456
    %v933 = vsel %vm931, %v193, 0
    %935 = vmatprep.subr.mxu0 0.0
    %936 = vmatpush1.msra.mxu0 %v933
    %937 = vmatprep.subr.mxu0 0.0
    %938 = vmatpush1.msra.mxu0 0.0
    %939 = vmatprep.subr.mxu0 0.0
    %940 = vmatpush1.msra.mxu0 0.0
    %941 = vmatprep.subr.mxu0 0.0
    %942 = vmatpush1.msra.mxu0 0.0
    %943 = vmatprep.subr.mxu0 0.0
    %944 = vmatpush1.msra.mxu0 0.0
    %945 = vmatprep.subr.mxu0 0.0
    %946 = vmatpush1.msra.mxu0 0.0
    %947 = vmatprep.subr.mxu0 0.0
    %948 = vmatpush1.msra.mxu0 0.0
    %949 = vmatprep.subr.mxu0 0.0
    %950 = vmatpush1.msra.mxu0 0.0
    %951 = vmatprep.subr.mxu0 0.0
    %952 = vmatpush1.msra.mxu0 0.0
    %953 = vmatprep.subr.mxu0 0.0
    %954 = vmatpush1.msra.mxu0 0.0
    %955 = vmatprep.subr.mxu0 0.0
    %956 = vmatpush1.msra.mxu0 0.0
    %957 = vmatprep.subr.mxu0 0.0
    %958 = vmatpush1.msra.mxu0 0.0
    %959 = vmatprep.subr.mxu0 0.0
    %960 = vmatpush1.msra.mxu0 0.0
    %961 = vmatprep.subr.mxu0 0.0
    %962 = vmatpush1.msra.mxu0 0.0
    %963 = vmatprep.subr.mxu0 0.0
    %964 = vmatpush1.msra.mxu0 0.0
    %965 = vmatprep.subr.mxu0 0.0
    %966 = vmatpush1.msra.mxu0 0.0
    %967 = vmatprep.subr.mxu0 0.0
    %968 = vmatpush1.msra.mxu0 0.0
    %969 = vmatprep.subr.mxu0 0.0
    %970 = vmatpush1.msra.mxu0 0.0
    %971 = vmatprep.subr.mxu0 0.0
    %972 = vmatpush1.msra.mxu0 0.0
    %973 = vmatprep.subr.mxu0 0.0
    %974 = vmatpush1.msra.mxu0 0.0
    %975 = vmatprep.subr.mxu0 0.0
    %976 = vmatpush1.msra.mxu0 0.0
    %977 = vmatprep.subr.mxu0 0.0
    %978 = vmatpush1.msra.mxu0 0.0
    %979 = vmatprep.subr.mxu0 0.0
    %980 = vmatpush1.msra.mxu0 0.0
    %981 = vmatprep.subr.mxu0 0.0
    %982 = vmatpush1.msra.mxu0 0.0
    %983 = vmatprep.subr.mxu0 0.0
    %984 = vmatpush1.msra.mxu0 0.0
    %985 = vmatprep.subr.mxu0 0.0
    %986 = vmatpush1.msra.mxu0 0.0
    %987 = vmatprep.subr.mxu0 0.0
    %988 = vmatpush1.msra.mxu0 0.0
    %989 = vmatprep.subr.mxu0 0.0
    %990 = vmatpush1.msra.mxu0 0.0
    %991 = vmatprep.subr.mxu0 0.0
    %992 = vmatpush1.msra.mxu0 0.0
    %993 = vmatprep.subr.mxu0 0.0
    %994 = vmatpush1.msra.mxu0 0.0
    %995 = vmatprep.subr.mxu0 0.0
    %996 = vmatpush1.msra.mxu0 0.0
    %997 = vmatprep.subr.mxu0 0.0
    %998 = vmatpush1.msra.mxu0 0.0
    %999 = vmatprep.mubr.f32.mxu0 0.0
    %1000 = vmatmul.mubr.f32.gmra.mrb[0].mxu0 %v926
    %v1001 = vpop.f32.mrb[0].mxu0
    %v1002 = vadd.f32 0.0, %v1001
    %v1003 = vpop.f32.mrb[0].mxu0
    %1004 = vmatprep.mubr.f32.mxu0 0.0
    %1005 = vmatmul.mubr.f32.gmra.mrb[0].mxu0 %v929
    %v1006 = vpop.f32.mrb[0].mxu0
    %v1007 = vadd.f32 0.0, %v1006
    %v1008 = vpop.f32.mrb[0].mxu0
    %1009 = vdwg.mxu0
    %v1011 = vsel %vm862, %v905, 0
    %1013 = vmatprep.subr.mxu0 0.0
    %1014 = vmatpush1.msra.mxu0 %v933
    %1015 = vmatprep.subr.mxu0 0.0
    %1016 = vmatpush1.msra.mxu0 0.0
    %1017 = vmatprep.subr.mxu0 0.0
    %1018 = vmatpush1.msra.mxu0 0.0
    %1019 = vmatprep.subr.mxu0 0.0
    %1020 = vmatpush1.msra.mxu0 0.0
    %1021 = vmatprep.subr.mxu0 0.0
    %1022 = vmatpush1.msra.mxu0 0.0
    %1023 = vmatprep.subr.mxu0 0.0
    %1024 = vmatpush1.msra.mxu0 0.0
    %1025 = vmatprep.subr.mxu0 0.0
    %1026 = vmatpush1.msra.mxu0 0.0
    %1027 = vmatprep.subr.mxu0 0.0
    %1028 = vmatpush1.msra.mxu0 0.0
    %1029 = vmatprep.subr.mxu0 0.0
    %1030 = vmatpush1.msra.mxu0 0.0
    %1031 = vmatprep.subr.mxu0 0.0
    %1032 = vmatpush1.msra.mxu0 0.0
    %1033 = vmatprep.subr.mxu0 0.0
    %1034 = vmatpush1.msra.mxu0 0.0
    %1035 = vmatprep.subr.mxu0 0.0
    %1036 = vmatpush1.msra.mxu0 0.0
    %1037 = vmatprep.subr.mxu0 0.0
    %1038 = vmatpush1.msra.mxu0 0.0
    %1039 = vmatprep.subr.mxu0 0.0
    %1040 = vmatpush1.msra.mxu0 0.0
    %1041 = vmatprep.subr.mxu0 0.0
    %1042 = vmatpush1.msra.mxu0 0.0
    %1043 = vmatprep.subr.mxu0 0.0
    %1044 = vmatpush1.msra.mxu0 0.0
    %1045 = vmatprep.subr.mxu0 0.0
    %1046 = vmatpush1.msra.mxu0 0.0
    %1047 = vmatprep.subr.mxu0 0.0
    %1048 = vmatpush1.msra.mxu0 0.0
    %1049 = vmatprep.subr.mxu0 0.0
    %1050 = vmatpush1.msra.mxu0 0.0
    %1051 = vmatprep.subr.mxu0 0.0
    %1052 = vmatpush1.msra.mxu0 0.0
    %1053 = vmatprep.subr.mxu0 0.0
    %1054 = vmatpush1.msra.mxu0 0.0
    %1055 = vmatprep.subr.mxu0 0.0
    %1056 = vmatpush1.msra.mxu0 0.0
    %1057 = vmatprep.subr.mxu0 0.0
    %1058 = vmatpush1.msra.mxu0 0.0
    %1059 = vmatprep.subr.mxu0 0.0
    %1060 = vmatpush1.msra.mxu0 0.0
    %1061 = vmatprep.subr.mxu0 0.0
    %1062 = vmatpush1.msra.mxu0 0.0
    %1063 = vmatprep.subr.mxu0 0.0
    %1064 = vmatpush1.msra.mxu0 0.0
    %1065 = vmatprep.subr.mxu0 0.0
    %1066 = vmatpush1.msra.mxu0 0.0
    %1067 = vmatprep.subr.mxu0 0.0
    %1068 = vmatpush1.msra.mxu0 0.0
    %1069 = vmatprep.subr.mxu0 0.0
    %1070 = vmatpush1.msra.mxu0 0.0
    %1071 = vmatprep.subr.mxu0 0.0
    %1072 = vmatpush1.msra.mxu0 0.0
    %1073 = vmatprep.subr.mxu0 0.0
    %1074 = vmatpush1.msra.mxu0 0.0
    %1075 = vmatprep.subr.mxu0 0.0
    %1076 = vmatpush1.msra.mxu0 0.0
    %1077 = vmatprep.mubr.f32.mxu0 0.0
    %1078 = vmatmul.mubr.f32.gmra.mrb[0].mxu0 %v1011
    %v1079 = vpop.f32.mrb[0].mxu0
    %v1080 = vadd.f32 0.0, %v1079
    %v1081 = vpop.f32.mrb[0].mxu0
    %1082 = vdwg.mxu0
    %v1083 = vrcp.pop %v924
    %v1084 = vmul.f32 1.0, %v1083
    %v1086 = vsel %vm862, %v1084, 0
    %1088 = vmatprep.subr.mxu0 0.0
    %1089 = vmatpush1.msra.mxu0 %v933
    %1090 = vmatprep.subr.mxu0 0.0
    %1091 = vmatpush1.msra.mxu0 0.0
    %1092 = vmatprep.subr.mxu0 0.0
    %1093 = vmatpush1.msra.mxu0 0.0
    %1094 = vmatprep.subr.mxu0 0.0
    %1095 = vmatpush1.msra.mxu0 0.0
    %1096 = vmatprep.subr.mxu0 0.0
    %1097 = vmatpush1.msra.mxu0 0.0
    %1098 = vmatprep.subr.mxu0 0.0
    %1099 = vmatpush1.msra.mxu0 0.0
    %1100 = vmatprep.subr.mxu0 0.0
    %1101 = vmatpush1.msra.mxu0 0.0
    %1102 = vmatprep.subr.mxu0 0.0
    %1103 = vmatpush1.msra.mxu0 0.0
    %1104 = vmatprep.subr.mxu0 0.0
    %1105 = vmatpush1.msra.mxu0 0.0
    %1106 = vmatprep.subr.mxu0 0.0
    %1107 = vmatpush1.msra.mxu0 0.0
    %1108 = vmatprep.subr.mxu0 0.0
    %1109 = vmatpush1.msra.mxu0 0.0
    %1110 = vmatprep.subr.mxu0 0.0
    %1111 = vmatpush1.msra.mxu0 0.0
    %1112 = vmatprep.subr.mxu0 0.0
    %1113 = vmatpush1.msra.mxu0 0.0
    %1114 = vmatprep.subr.mxu0 0.0
    %1115 = vmatpush1.msra.mxu0 0.0
    %1116 = vmatprep.subr.mxu0 0.0
    %1117 = vmatpush1.msra.mxu0 0.0
    %1118 = vmatprep.subr.mxu0 0.0
    %1119 = vmatpush1.msra.mxu0 0.0
    %1120 = vmatprep.subr.mxu0 0.0
    %1121 = vmatpush1.msra.mxu0 0.0
    %1122 = vmatprep.subr.mxu0 0.0
    %1123 = vmatpush1.msra.mxu0 0.0
    %1124 = vmatprep.subr.mxu0 0.0
    %1125 = vmatpush1.msra.mxu0 0.0
    %1126 = vmatprep.subr.mxu0 0.0
    %1127 = vmatpush1.msra.mxu0 0.0
    %1128 = vmatprep.subr.mxu0 0.0
    %1129 = vmatpush1.msra.mxu0 0.0
    %1130 = vmatprep.subr.mxu0 0.0
    %1131 = vmatpush1.msra.mxu0 0.0
    %1132 = vmatprep.subr.mxu0 0.0
    %1133 = vmatpush1.msra.mxu0 0.0
    %1134 = vmatprep.subr.mxu0 0.0
    %1135 = vmatpush1.msra.mxu0 0.0
    %1136 = vmatprep.subr.mxu0 0.0
    %1137 = vmatpush1.msra.mxu0 0.0
    %1138 = vmatprep.subr.mxu0 0.0
    %1139 = vmatpush1.msra.mxu0 0.0
    %1140 = vmatprep.subr.mxu0 0.0
    %1141 = vmatpush1.msra.mxu0 0.0
    %1142 = vmatprep.subr.mxu0 0.0
    %1143 = vmatpush1.msra.mxu0 0.0
    %1144 = vmatprep.subr.mxu0 0.0
    %1145 = vmatpush1.msra.mxu0 0.0
    %1146 = vmatprep.subr.mxu0 0.0
    %1147 = vmatpush1.msra.mxu0 0.0
    %1148 = vmatprep.subr.mxu0 0.0
    %1149 = vmatpush1.msra.mxu0 0.0
    %1150 = vmatprep.subr.mxu0 0.0
    %1151 = vmatpush1.msra.mxu0 0.0
    %1152 = vmatprep.mubr.f32.mxu0 0.0
    %1153 = vmatmul.mubr.f32.gmra.mrb[0].mxu0 %v1086
    %v1154 = vpop.f32.mrb[0].mxu0
    %v1155 = vadd.f32 0.0, %v1154
    %v1156 = vpop.f32.mrb[0].mxu0
    %1157 = vdwg.mxu0
    %v1158 = vlaneseq
    %v1159 = vshrl.u32 %v1158, 7
    %v1160 = vsub.s32 0, %v1159
    %v1161 = vrot.slane %v439, %v1160
    %v1162 = vmul.f32 %v1080, %v1161
    %v1163 = vmul.f32 %v1002, %v720
    %v1164 = vmul.f32 %v1007, %v725
    %v1165 = vsel %vm217, %v1163, 0.0
    %v1166 = vrot.slane %v1165, 4
    %v1167 = vadd.f32 %v1165, %v1166
    %v1168 = vrot.slane %v1167, 2
    %v1169 = vadd.f32 %v1167, %v1168
    %v1170 = vrot.slane %v1169, 1
    %v1171 = vadd.f32 %v1169, %v1170
    %v1172 = vsel %vm217, %v1164, 0.0
    %v1173 = vrot.slane %v1172, 4
    %v1174 = vadd.f32 %v1172, %v1173
    %v1175 = vrot.slane %v1174, 2
    %v1176 = vadd.f32 %v1174, %v1175
    %v1177 = vrot.slane %v1176, 1
    %v1178 = vadd.f32 %v1176, %v1177
    %v1181 = vsel %vm900, %v1178, %v1171
    %v1183 = vadd.f32 %v1162, %v1181
    %v1184 = vmul.f32 %v1183, %v1155
    %v1185 = vld [vmem:[%s13] sm:$0xff]
    %v1186 = vld [vmem:[%s13 + $0x8] sm:$0xff]
    %v1187 = vld [vmem:[%s13 + $0x10] sm:$0xff]
    %v1188 = vld [vmem:[%s13 + $0x18] sm:$0xff]
    %v1189 = vld [vmem:[#allocation16] sm:$0x1]
    %v1191 = vlaneseq
    %v1192 = vshrl.u32 %v1191, 7
    %v1193 = vsub.s32 0, %v1192
    %v1194 = vrot.slane %v1189, %v1193
    %v1197 = vsel %vm217, %v1184, 0
    %1199 = vmatprep.subr.mxu0 0.0
    %1200 = vmatpush1.msra.mxu0 %v1185
    %1201 = vmatprep.subr.mxu0 0.0
    %1202 = vmatpush1.msra.mxu0 %v1186
    %1203 = vmatprep.subr.mxu0 0.0
    %1204 = vmatpush1.msra.mxu0 %v1187
    %1205 = vmatprep.subr.mxu0 0.0
    %1206 = vmatpush1.msra.mxu0 %v1188
    %1207 = vmatprep.subr.mxu0 0.0
    %1208 = vmatpush1.msra.mxu0 0.0
    %1209 = vmatprep.subr.mxu0 0.0
    %1210 = vmatpush1.msra.mxu0 0.0
    %1211 = vmatprep.subr.mxu0 0.0
    %1212 = vmatpush1.msra.mxu0 0.0
    %1213 = vmatprep.subr.mxu0 0.0
    %1214 = vmatpush1.msra.mxu0 0.0
    %1215 = vmatprep.subr.mxu0 0.0
    %1216 = vmatpush1.msra.mxu0 0.0
    %1217 = vmatprep.subr.mxu0 0.0
    %1218 = vmatpush1.msra.mxu0 0.0
    %1219 = vmatprep.subr.mxu0 0.0
    %1220 = vmatpush1.msra.mxu0 0.0
    %1221 = vmatprep.subr.mxu0 0.0
    %1222 = vmatpush1.msra.mxu0 0.0
    %1223 = vmatprep.subr.mxu0 0.0
    %1224 = vmatpush1.msra.mxu0 0.0
    %1225 = vmatprep.subr.mxu0 0.0
    %1226 = vmatpush1.msra.mxu0 0.0
    %1227 = vmatprep.subr.mxu0 0.0
    %1228 = vmatpush1.msra.mxu0 0.0
    %1229 = vmatprep.subr.mxu0 0.0
    %1230 = vmatpush1.msra.mxu0 0.0
    %1231 = vmatprep.subr.mxu0 0.0
    %1232 = vmatpush1.msra.mxu0 0.0
    %1233 = vmatprep.subr.mxu0 0.0
    %1234 = vmatpush1.msra.mxu0 0.0
    %1235 = vmatprep.subr.mxu0 0.0
    %1236 = vmatpush1.msra.mxu0 0.0
    %1237 = vmatprep.subr.mxu0 0.0
    %1238 = vmatpush1.msra.mxu0 0.0
    %1239 = vmatprep.subr.mxu0 0.0
    %1240 = vmatpush1.msra.mxu0 0.0
    %1241 = vmatprep.subr.mxu0 0.0
    %1242 = vmatpush1.msra.mxu0 0.0
    %1243 = vmatprep.subr.mxu0 0.0
    %1244 = vmatpush1.msra.mxu0 0.0
    %1245 = vmatprep.subr.mxu0 0.0
    %1246 = vmatpush1.msra.mxu0 0.0
    %1247 = vmatprep.subr.mxu0 0.0
    %1248 = vmatpush1.msra.mxu0 0.0
    %1249 = vmatprep.subr.mxu0 0.0
    %1250 = vmatpush1.msra.mxu0 0.0
    %1251 = vmatprep.subr.mxu0 0.0
    %1252 = vmatpush1.msra.mxu0 0.0
    %1253 = vmatprep.subr.mxu0 0.0
    %1254 = vmatpush1.msra.mxu0 0.0
    %1255 = vmatprep.subr.mxu0 0.0
    %1256 = vmatpush1.msra.mxu0 0.0
    %1257 = vmatprep.subr.mxu0 0.0
    %1258 = vmatpush1.msra.mxu0 0.0
    %1259 = vmatprep.subr.mxu0 0.0
    %1260 = vmatpush1.msra.mxu0 0.0
    %1261 = vmatprep.subr.mxu0 0.0
    %1262 = vmatpush1.msra.mxu0 0.0
    %1263 = vmatprep.mubr.f32.mxu0 0.0
    %1264 = vmatmul.mubr.f32.gmra.mrb[0].mxu0 %v1197
    %v1265 = vpop.f32.mrb[0].mxu0
    %v1266 = vadd.f32 %v1194, %v1265
    %v1267 = vpop.f32.mrb[0].mxu0
    %1268 = vdwg.mxu0
    %v1270 = vlaneseq
    %v1271 = vshrl.u32 %v1270, 7
    %v1272 = vsub.s32 0, %v1271
    %v1273 = vrot.slane %v194, %v1272
    %v1275 = vadd.f32 %v1266, %v1273
    %v1276 = vld [vmem:[#allocation17] sm:$0x1]
    %v1277 = vld [vmem:[%s16] sm:$0x1]
    %vm1278 = vcmask 254976
    %v1279 = vsel %vm1278, %v1275, 0.0
    %1280 = vadd.xlane.f32.xlu0 %v1279
    %v1281 = vpop.xlane.xlu0 %1280
    %v1282 = vmul.f32 %v1281, %v199
    %v1283 = vsub.f32 %v1275, %v1282
    %v1284 = vmul.f32 %v1283, %v1283
    %v1285 = vsel %vm1278, %v1284, 0.0
    %1286 = vadd.xlane.f32.xlu0 %v1285
    %v1287 = vpop.xlane.xlu0 %1286
    %v1288 = vmul.f32 %v1287, %v199
    %v1289 = vadd.f32 %v1288, 1e-06
    %v1290 = vrsqrt.pop %v1289
    %v1291 = vmul.f32 %v1283, %v1290
    %v1293 = vlaneseq
    %v1294 = vshrl.u32 %v1293, 7
    %v1295 = vsub.s32 0, %v1294
    %v1296 = vrot.slane %v1276, %v1295
    %v1298 = vmul.f32 %v1291, %v1296
    %v1300 = vlaneseq
    %v1301 = vshrl.u32 %v1300, 7
    %v1302 = vsub.s32 0, %v1301
    %v1303 = vrot.slane %v1277, %v1302
    %v1305 = vadd.f32 %v1298, %v1303
    %v1306 = vld [vmem:[%s17] sm:$0xff]
    %v1307 = vld [vmem:[%s17 + $0x8] sm:$0xff]
    %v1308 = vld [vmem:[%s17 + $0x10] sm:$0xff]
    %v1309 = vld [vmem:[%s17 + $0x18] sm:$0xff]
    %v1310 = vld [vmem:[%s18] sm:$0x1]
    %v1312 = vlaneseq
    %v1313 = vshrl.u32 %v1312, 7
    %v1314 = vsub.s32 0, %v1313
    %v1315 = vrot.slane %v1310, %v1314
    %v1318 = vsel %vm217, %v1305, 0
    %1320 = vmatprep.subr.mxu0 0.0
    %1321 = vmatpush1.msra.mxu0 %v1306
    %1322 = vmatprep.subr.mxu0 0.0
    %1323 = vmatpush1.msra.mxu0 %v1307
    %1324 = vmatprep.subr.mxu0 0.0
    %1325 = vmatpush1.msra.mxu0 %v1308
    %1326 = vmatprep.subr.mxu0 0.0
    %1327 = vmatpush1.msra.mxu0 %v1309
    %1328 = vmatprep.subr.mxu0 0.0
    %1329 = vmatpush1.msra.mxu0 0.0
    %1330 = vmatprep.subr.mxu0 0.0
    %1331 = vmatpush1.msra.mxu0 0.0
    %1332 = vmatprep.subr.mxu0 0.0
    %1333 = vmatpush1.msra.mxu0 0.0
    %1334 = vmatprep.subr.mxu0 0.0
    %1335 = vmatpush1.msra.mxu0 0.0
    %1336 = vmatprep.subr.mxu0 0.0
    %1337 = vmatpush1.msra.mxu0 0.0
    %1338 = vmatprep.subr.mxu0 0.0
    %1339 = vmatpush1.msra.mxu0 0.0
    %1340 = vmatprep.subr.mxu0 0.0
    %1341 = vmatpush1.msra.mxu0 0.0
    %1342 = vmatprep.subr.mxu0 0.0
    %1343 = vmatpush1.msra.mxu0 0.0
    %1344 = vmatprep.subr.mxu0 0.0
    %1345 = vmatpush1.msra.mxu0 0.0
    %1346 = vmatprep.subr.mxu0 0.0
    %1347 = vmatpush1.msra.mxu0 0.0
    %1348 = vmatprep.subr.mxu0 0.0
    %1349 = vmatpush1.msra.mxu0 0.0
    %1350 = vmatprep.subr.mxu0 0.0
    %1351 = vmatpush1.msra.mxu0 0.0
    %1352 = vmatprep.subr.mxu0 0.0
    %1353 = vmatpush1.msra.mxu0 0.0
    %1354 = vmatprep.subr.mxu0 0.0
    %1355 = vmatpush1.msra.mxu0 0.0
    %1356 = vmatprep.subr.mxu0 0.0
    %1357 = vmatpush1.msra.mxu0 0.0
    %1358 = vmatprep.subr.mxu0 0.0
    %1359 = vmatpush1.msra.mxu0 0.0
    %1360 = vmatprep.subr.mxu0 0.0
    %1361 = vmatpush1.msra.mxu0 0.0
    %1362 = vmatprep.subr.mxu0 0.0
    %1363 = vmatpush1.msra.mxu0 0.0
    %1364 = vmatprep.subr.mxu0 0.0
    %1365 = vmatpush1.msra.mxu0 0.0
    %1366 = vmatprep.subr.mxu0 0.0
    %1367 = vmatpush1.msra.mxu0 0.0
    %1368 = vmatprep.subr.mxu0 0.0
    %1369 = vmatpush1.msra.mxu0 0.0
    %1370 = vmatprep.subr.mxu0 0.0
    %1371 = vmatpush1.msra.mxu0 0.0
    %1372 = vmatprep.subr.mxu0 0.0
    %1373 = vmatpush1.msra.mxu0 0.0
    %1374 = vmatprep.subr.mxu0 0.0
    %1375 = vmatpush1.msra.mxu0 0.0
    %1376 = vmatprep.subr.mxu0 0.0
    %1377 = vmatpush1.msra.mxu0 0.0
    %1378 = vmatprep.subr.mxu0 0.0
    %1379 = vmatpush1.msra.mxu0 0.0
    %1380 = vmatprep.subr.mxu0 0.0
    %1381 = vmatpush1.msra.mxu0 0.0
    %1382 = vmatprep.subr.mxu0 0.0
    %1383 = vmatpush1.msra.mxu0 0.0
    %1384 = vmatprep.mubr.f32.mxu0 0.0
    %1385 = vmatmul.mubr.f32.gmra.mrb[0].mxu0 %v1318
    %v1386 = vpop.f32.mrb[0].mxu0
    %v1387 = vadd.f32 %v1315, %v1386
    %v1388 = vpop.f32.mrb[0].mxu0
    %1389 = vdwg.mxu0
    %v1390 = vmax.f32 %v1387, 0.0
    %v1391 = vld [vmem:[%s19] sm:$0xff]
    %v1392 = vld [vmem:[%s19 + $0x8] sm:$0xff]
    %v1393 = vld [vmem:[%s19 + $0x10] sm:$0xff]
    %v1394 = vld [vmem:[%s19 + $0x18] sm:$0xff]
    %v1395 = vld [vmem:[%s19 + $0x20] sm:$0xff]
    %v1396 = vld [vmem:[%s19 + $0x28] sm:$0xff]
    %v1397 = vld [vmem:[%s19 + $0x30] sm:$0xff]
    %v1398 = vld [vmem:[%s19 + $0x38] sm:$0xff]
    %v1399 = vld [vmem:[%s20] sm:$0x1]
    %v1401 = vlaneseq
    %v1402 = vshrl.u32 %v1401, 7
    %v1403 = vsub.s32 0, %v1402
    %v1404 = vrot.slane %v1399, %v1403
    %vm1406 = vcmask 523264
    %v1408 = vsel %vm1406, %v1390, 0
    %1410 = vmatprep.subr.mxu0 0.0
    %1411 = vmatpush1.msra.mxu0 %v1391
    %1412 = vmatprep.subr.mxu0 0.0
    %1413 = vmatpush1.msra.mxu0 %v1392
    %1414 = vmatprep.subr.mxu0 0.0
    %1415 = vmatpush1.msra.mxu0 %v1393
    %1416 = vmatprep.subr.mxu0 0.0
    %1417 = vmatpush1.msra.mxu0 %v1394
    %1418 = vmatprep.subr.mxu0 0.0
    %1419 = vmatpush1.msra.mxu0 %v1395
    %1420 = vmatprep.subr.mxu0 0.0
    %1421 = vmatpush1.msra.mxu0 %v1396
    %1422 = vmatprep.subr.mxu0 0.0
    %1423 = vmatpush1.msra.mxu0 %v1397
    %1424 = vmatprep.subr.mxu0 0.0
    %1425 = vmatpush1.msra.mxu0 %v1398
    %1426 = vmatprep.subr.mxu0 0.0
    %1427 = vmatpush1.msra.mxu0 0.0
    %1428 = vmatprep.subr.mxu0 0.0
    %1429 = vmatpush1.msra.mxu0 0.0
    %1430 = vmatprep.subr.mxu0 0.0
    %1431 = vmatpush1.msra.mxu0 0.0
    %1432 = vmatprep.subr.mxu0 0.0
    %1433 = vmatpush1.msra.mxu0 0.0
    %1434 = vmatprep.subr.mxu0 0.0
    %1435 = vmatpush1.msra.mxu0 0.0
    %1436 = vmatprep.subr.mxu0 0.0
    %1437 = vmatpush1.msra.mxu0 0.0
    %1438 = vmatprep.subr.mxu0 0.0
    %1439 = vmatpush1.msra.mxu0 0.0
    %1440 = vmatprep.subr.mxu0 0.0
    %1441 = vmatpush1.msra.mxu0 0.0
    %1442 = vmatprep.subr.mxu0 0.0
    %1443 = vmatpush1.msra.mxu0 0.0
    %1444 = vmatprep.subr.mxu0 0.0
    %1445 = vmatpush1.msra.mxu0 0.0
    %1446 = vmatprep.subr.mxu0 0.0
    %1447 = vmatpush1.msra.mxu0 0.0
    %1448 = vmatprep.subr.mxu0 0.0
    %1449 = vmatpush1.msra.mxu0 0.0
    %1450 = vmatprep.subr.mxu0 0.0
    %1451 = vmatpush1.msra.mxu0 0.0
    %1452 = vmatprep.subr.mxu0 0.0
    %1453 = vmatpush1.msra.mxu0 0.0
    %1454 = vmatprep.subr.mxu0 0.0
    %1455 = vmatpush1.msra.mxu0 0.0
    %1456 = vmatprep.subr.mxu0 0.0
    %1457 = vmatpush1.msra.mxu0 0.0
    %1458 = vmatprep.subr.mxu0 0.0
    %1459 = vmatpush1.msra.mxu0 0.0
    %1460 = vmatprep.subr.mxu0 0.0
    %1461 = vmatpush1.msra.mxu0 0.0
    %1462 = vmatprep.subr.mxu0 0.0
    %1463 = vmatpush1.msra.mxu0 0.0
    %1464 = vmatprep.subr.mxu0 0.0
    %1465 = vmatpush1.msra.mxu0 0.0
    %1466 = vmatprep.subr.mxu0 0.0
    %1467 = vmatpush1.msra.mxu0 0.0
    %1468 = vmatprep.subr.mxu0 0.0
    %1469 = vmatpush1.msra.mxu0 0.0
    %1470 = vmatprep.subr.mxu0 0.0
    %1471 = vmatpush1.msra.mxu0 0.0
    %1472 = vmatprep.subr.mxu0 0.0
    %1473 = vmatpush1.msra.mxu0 0.0
    %1474 = vmatprep.mubr.f32.mxu0 0.0
    %1475 = vmatmul.mubr.f32.gmra.mrb[0].mxu0 %v1408
    %v1476 = vpop.f32.mrb[0].mxu0
    %v1477 = vadd.f32 %v1404, %v1476
    %v1478 = vpop.f32.mrb[0].mxu0
    %1479 = vdwg.mxu0
    %v1480 = vadd.f32 %v1477, %v1275
    %1481 = vst.msk [vmem:[#allocation19] sm:$0x3] %vm1278, %v1480
    // Predicated region
    $region126: #{tpu_custom_call.1} parent=1 // pred_check
      _
    $region127: #{tpu_custom_call.1} parent=1 // pred_check_branch
      %1483 = sbr.rel (0) target = $region129
    $region128: #{tpu_custom_call.1} parent=1 // pred_region
      %s1485 = ssub.s32 32, 32
      %1486 = vsyncadd [#allocation4], %s1485
      %s1488 = sshll.u32 [#allocation19], 4
      %s1489 = int_to_ptr.vmem [resolvable:$true] %s1488
      %1491 = dma.vmem_to_hbm [thread:$0]  %s1489, 32, %s21, [#allocation4]
    $region129: #{tpu_custom_call.1} parent=1 // pred_fallthru
      _
    // Predicated region
    $region130: #{tpu_custom_call.1} parent=1 // pred_check
      _
    $region131: #{tpu_custom_call.1} parent=1 // pred_check_branch
      %1493 = sbr.rel (0) target = $region133
    $region132: #{tpu_custom_call.1} parent=1 // pred_region
      %1494 = dma.done [#allocation4], 32
    $region133: #{tpu_custom_call.1} parent=1 // pred_fallthru
      _
    %1495 = vsyncpa [#allocation3], 1
    %1496 = vsyncpa [#allocation6], 1
    %1497 = vsyncpa [#allocation9], 1
    %1498 = vsyncpa [#allocation12], 1
    %1499 = vsyncpa [#allocation15], 1
    %1500 = vsyncpa [#allocation18], 1
    %1501 = vsyncpa [#allocation4], 1

</llo_original>
